<compile_context>
chip_gen: v7x
topology: tpu7x:2x2x1
jax: 0.10.0
libtpu: 0.0.40
codegen_flags: <defaults>
</compile_context>

<pallas_src>
import functools

import jax
import jax.numpy as jnp
from jax.experimental import pallas as pl
from jax.experimental.pallas import tpu as pltpu


N_LAYERS = 2
BN_EPS = 1e-5


# ----------------------------------------------------------------------------
# Fused kernel: both conv blocks in one invocation, everything in VMEM.
# ----------------------------------------------------------------------------
def _convnet_kernel(x_ref, w_ref, scale_ref, shift_ref, o_ref, hpad_ref):
    """Fused 2-block ConvNet forward.

    x_ref:     (N, Cp, Lp)    spatially + channel padded input (Lp = L + 2*pad)
    w_ref:     (2, K, Cp, Cp) conv weights, tap-major, (out_ch, in_ch) per tap
    scale_ref: (2, Cp, 1)     folded BatchNorm scale
    shift_ref: (2, Cp, 1)     folded conv-bias + BatchNorm shift
    o_ref:     (N, Cp, L)     output
    hpad_ref:  (Cp, Lp)       VMEM scratch: padded layer-1 activation
    """
    N, Cp, Lp = x_ref.shape
    K = w_ref.shape[1]
    L = o_ref.shape[2]
    pad = (K - 1) // 2

    def conv_bn_relu(layer, xp):
        # xp: (Cp, Lp) padded input. Cross-correlation as K tap matmuls.
        acc = jnp.dot(w_ref[layer, 0], xp[:, 0:L],
                      preferred_element_type=jnp.float32)
        for k in range(1, K):
            acc = acc + jnp.dot(w_ref[layer, k], xp[:, k:k + L],
                                preferred_element_type=jnp.float32)
        # Folded conv-bias + BatchNorm affine, then ReLU (Dropout: eval = id).
        return jnp.maximum(acc * scale_ref[layer] + shift_ref[layer], 0.0)

    # Only the 2*pad boundary columns of the scratch need to stay zero; the
    # interior is overwritten for every sample, so zero once up front.
    hpad_ref[...] = jnp.zeros_like(hpad_ref)

    for n in range(N):                          # tiny static batch loop
        h1 = conv_bn_relu(0, x_ref[n])          # (Cp, L)
        hpad_ref[:, pad:pad + L] = h1           # re-pad for block 2
        o_ref[n] = conv_bn_relu(1, hpad_ref[...])


@jax.jit
def convnet_forward(x, w_taps, scale, shift):
    """x: (N, C, L) f32 -> (N, C, L) f32. Fused eval-mode ConvNet forward."""
    N, C, L = x.shape
    n_layers, K, Cp, _ = w_taps.shape
    pad = (K - 1) // 2
    Lp = L + 2 * pad

    # Layout plumbing in the wrapper: pad channels to the 32-sublane tile and
    # spatially zero-pad once so the kernel only needs static slices.
    x_pad = jnp.zeros((N, Cp, Lp), jnp.float32)
    x_pad = x_pad.at[:, :C, pad:pad + L].set(x.astype(jnp.float32))

    out = pl.pallas_call(
        _convnet_kernel,
        out_shape=jax.ShapeDtypeStruct((N, Cp, L), jnp.float32),
        in_specs=[
            pl.BlockSpec((N, Cp, Lp), lambda: (0, 0, 0)),
            pl.BlockSpec((n_layers, K, Cp, Cp), lambda: (0, 0, 0, 0)),
            pl.BlockSpec((n_layers, Cp, 1), lambda: (0, 0, 0)),
            pl.BlockSpec((n_layers, Cp, 1), lambda: (0, 0, 0)),
        ],
        out_specs=pl.BlockSpec((N, Cp, L), lambda: (0, 0, 0)),
        scratch_shapes=[pltpu.VMEM((Cp, Lp), jnp.float32)],
    )(x_pad, w_taps, scale, shift)
    return out[:, :C, :]


# ----------------------------------------------------------------------------
# Parameters (PyTorch-style) + folding into kernel-friendly arrays.
# ----------------------------------------------------------------------------
def init_params(key, channels=29, kernel_size=3):
    """Per layer: conv W (O,I,K), conv b, BN gamma/beta/running_mean/var."""
    assert kernel_size % 2 == 1, "only odd kernel_size supported"
    layer_keys = jax.random.split(key, N_LAYERS)
    bound = 1.0 / jnp.sqrt(channels * kernel_size)
    layers = []
    for lk in layer_keys:
        k = jax.random.split(lk, 6)
        w = jax.random.uniform(k[0], (channels, channels, kernel_size),
                               jnp.float32, -bound, bound)
        b = jax.random.uniform(k[1], (channels,), jnp.float32, -bound, bound)
        gamma = jax.random.uniform(k[2], (channels,), jnp.float32, 0.5, 1.5)
        beta = jax.random.uniform(k[3], (channels,), jnp.float32, -0.5, 0.5)
        mean = 0.1 * jax.random.normal(k[4], (channels,), jnp.float32)
        var = jax.random.uniform(k[5], (channels,), jnp.float32, 0.5, 1.5)
        layers.append((w, b, gamma, beta, mean, var))
    return layers


def fold_params(layers, channels_padded):
    """Fold conv bias + eval-mode BatchNorm into per-channel scale/shift and
    repack conv weights tap-major with zero channel padding (29 -> Cp)."""
    C, _, K = layers[0][0].shape
    Cp = channels_padded
    w_taps = jnp.zeros((len(layers), K, Cp, Cp), jnp.float32)
    scale = jnp.zeros((len(layers), Cp, 1), jnp.float32)
    shift = jnp.zeros((len(layers), Cp, 1), jnp.float32)
    for li, (w, b, gamma, beta, mean, var) in enumerate(layers):
        s = gamma / jnp.sqrt(var + BN_EPS)
        sh = s * (b - mean) + beta
        w_taps = w_taps.at[li, :, :C, :C].set(jnp.transpose(w, (2, 0, 1)))
        scale = scale.at[li, :C, 0].set(s)
        shift = shift.at[li, :C, 0].set(sh)
    return w_taps, scale, shift


# ----------------------------------------------------------------------------
# Pure-JAX reference (eval-mode PyTorch semantics) for a correctness check.
# ----------------------------------------------------------------------------
def reference_forward(x, layers):
    out = x
    for (w, b, gamma, beta, mean, var) in layers:
        O, _, K = w.shape
        pad = (K - 1) // 2
        Nb, _, L = out.shape
        xp = jnp.pad(out, ((0, 0), (0, 0), (pad, pad)))
        conv = jnp.zeros((Nb, O, L), jnp.float32)
        for k in range(K):
            conv = conv + jnp.einsum("oi,nil->nol", w[:, :, k],
                                     xp[:, :, k:k + L])
        conv = conv + b[None, :, None]
        bn = (gamma[None, :, None] * (conv - mean[None, :, None])
              / jnp.sqrt(var[None, :, None] + BN_EPS) + beta[None, :, None])
        out = jnp.maximum(bn, 0.0)   # ReLU; Dropout is identity in eval
    return out


if __name__ == "__main__":
    # config = {'kernel_size': 3, 'conv_dropout': 0.1} (dropout inactive: eval)
    BATCH, CHANNELS, LENGTH, KSIZE = 2, 29, 128, 3
    C_PAD = 32   # channels padded to the sublane tile

    key = jax.random.PRNGKey(0)
    kx, kp = jax.random.split(key)
    x = jax.random.normal(kx, (BATCH, CHANNELS, LENGTH), jnp.float32)

    layers = init_params(kp, CHANNELS, KSIZE)
    w_taps, scale, shift = fold_params(layers, C_PAD)

    out = convnet_forward(x, w_taps, scale, shift)
    out = jax.block_until_ready(out)
    assert out.shape == (BATCH, CHANNELS, LENGTH)

    ref = reference_forward(x, layers)
    assert jnp.allclose(out, ref, atol=2e-3, rtol=2e-3)

    print("KERNEL_OK")
</pallas_src>

<mosaic_0001>
module attributes {stable_mosaic.version = 11 : i64} {
  func.func @_convnet_kernel(%arg0: memref<2x32x130xf32, #tpu.memory_space<vmem>>, %arg1: memref<2x3x32x32xf32, #tpu.memory_space<vmem>>, %arg2: memref<2x32x1xf32, #tpu.memory_space<vmem>>, %arg3: memref<2x32x1xf32, #tpu.memory_space<vmem>>, %arg4: memref<2x32x128xf32, #tpu.memory_space<vmem>>, %arg5: memref<32x130xf32, #tpu.memory_space<vmem>>) attributes {dimension_semantics = [], scalar_prefetch = 0 : i64, scratch_operands = 1 : i64, tpu.core_type = #tpu.core_type<tc>} {
    %cst = arith.constant 0.000000e+00 : f32
    %0 = vector.broadcast %cst : f32 to vector<32x130xf32>
    %c0 = arith.constant 0 : index
    %c0_0 = arith.constant 0 : index
    %1 = vector.load %arg5[%c0, %c0_0] : memref<32x130xf32, #tpu.memory_space<vmem>>, vector<32x130xf32>
    tpu.vector_store %arg5[%c0, %c0_0], %0 {strides = array<i32>} : memref<32x130xf32, #tpu.memory_space<vmem>>, vector<32x130xf32>,
    %c0_1 = arith.constant 0 : index
    %c0_2 = arith.constant 0 : index
    %c0_3 = arith.constant 0 : index
    %2 = vector.load %arg0[%c0_1, %c0_2, %c0_3] : memref<2x32x130xf32, #tpu.memory_space<vmem>>, vector<1x32x130xf32>
    %3 = vector.shape_cast %2 : vector<1x32x130xf32> to vector<32x130xf32>
    %c0_4 = arith.constant 0 : index
    %c0_5 = arith.constant 0 : index
    %c0_6 = arith.constant 0 : index
    %c0_7 = arith.constant 0 : index
    %4 = vector.load %arg1[%c0_4, %c0_5, %c0_6, %c0_7] : memref<2x3x32x32xf32, #tpu.memory_space<vmem>>, vector<1x1x32x32xf32>
    %5 = vector.shape_cast %4 : vector<1x1x32x32xf32> to vector<32x32xf32>
    %6 = vector.extract_strided_slice %3 {offsets = [0, 0], sizes = [32, 128], strides = [1, 1]} : vector<32x130xf32> to vector<32x128xf32>
    %cst_8 = arith.constant dense<0.000000e+00> : vector<32x128xf32>
    %7 = tpu.matmul %5, %6, %cst_8 {dimension_numbers = #tpu.dot_dimension_numbers<[1], [0], [0], [1], [0, 0, 1, 1], [], []>} : vector<32x32xf32>, vector<32x128xf32>, vector<32x128xf32> -> vector<32x128xf32>
    %c0_9 = arith.constant 0 : index
    %c1 = arith.constant 1 : index
    %c0_10 = arith.constant 0 : index
    %c0_11 = arith.constant 0 : index
    %8 = vector.load %arg1[%c0_9, %c1, %c0_10, %c0_11] : memref<2x3x32x32xf32, #tpu.memory_space<vmem>>, vector<1x1x32x32xf32>
    %9 = vector.shape_cast %8 : vector<1x1x32x32xf32> to vector<32x32xf32>
    %10 = vector.extract_strided_slice %3 {offsets = [0, 1], sizes = [32, 128], strides = [1, 1]} : vector<32x130xf32> to vector<32x128xf32>
    %cst_12 = arith.constant dense<0.000000e+00> : vector<32x128xf32>
    %11 = tpu.matmul %9, %10, %cst_12 {dimension_numbers = #tpu.dot_dimension_numbers<[1], [0], [0], [1], [0, 0, 1, 1], [], []>} : vector<32x32xf32>, vector<32x128xf32>, vector<32x128xf32> -> vector<32x128xf32>
    %12 = arith.addf %7, %11 : vector<32x128xf32>
    %c0_13 = arith.constant 0 : index
    %c2 = arith.constant 2 : index
    %c0_14 = arith.constant 0 : index
    %c0_15 = arith.constant 0 : index
    %13 = vector.load %arg1[%c0_13, %c2, %c0_14, %c0_15] : memref<2x3x32x32xf32, #tpu.memory_space<vmem>>, vector<1x1x32x32xf32>
    %14 = vector.shape_cast %13 : vector<1x1x32x32xf32> to vector<32x32xf32>
    %15 = vector.extract_strided_slice %3 {offsets = [0, 2], sizes = [32, 128], strides = [1, 1]} : vector<32x130xf32> to vector<32x128xf32>
    %cst_16 = arith.constant dense<0.000000e+00> : vector<32x128xf32>
    %16 = tpu.matmul %14, %15, %cst_16 {dimension_numbers = #tpu.dot_dimension_numbers<[1], [0], [0], [1], [0, 0, 1, 1], [], []>} : vector<32x32xf32>, vector<32x128xf32>, vector<32x128xf32> -> vector<32x128xf32>
    %17 = arith.addf %12, %16 : vector<32x128xf32>
    %c0_17 = arith.constant 0 : index
    %c0_18 = arith.constant 0 : index
    %c0_19 = arith.constant 0 : index
    %18 = vector.load %arg2[%c0_17, %c0_18, %c0_19] : memref<2x32x1xf32, #tpu.memory_space<vmem>>, vector<1x32x1xf32>
    %19 = vector.shape_cast %18 : vector<1x32x1xf32> to vector<32x1xf32>
    %20 = vector.broadcast %19 : vector<32x1xf32> to vector<32x128xf32>
    %21 = arith.mulf %17, %20 : vector<32x128xf32>
    %c0_20 = arith.constant 0 : index
    %c0_21 = arith.constant 0 : index
    %c0_22 = arith.constant 0 : index
    %22 = vector.load %arg3[%c0_20, %c0_21, %c0_22] : memref<2x32x1xf32, #tpu.memory_space<vmem>>, vector<1x32x1xf32>
    %23 = vector.shape_cast %22 : vector<1x32x1xf32> to vector<32x1xf32>
    %24 = vector.broadcast %23 : vector<32x1xf32> to vector<32x128xf32>
    %25 = arith.addf %21, %24 : vector<32x128xf32>
    %cst_23 = arith.constant 0.000000e+00 : f32
    %26 = vector.broadcast %cst_23 : f32 to vector<32x128xf32>
    %27 = arith.maximumf %25, %26 : vector<32x128xf32>
    %c0_24 = arith.constant 0 : index
    %c1_25 = arith.constant 1 : index
    %28 = vector.load %arg5[%c0_24, %c1_25] : memref<32x130xf32, #tpu.memory_space<vmem>>, vector<32x128xf32>
    tpu.vector_store %arg5[%c0_24, %c1_25], %27 {strides = array<i32>} : memref<32x130xf32, #tpu.memory_space<vmem>>, vector<32x128xf32>,
    %c0_26 = arith.constant 0 : index
    %c0_27 = arith.constant 0 : index
    %29 = vector.load %arg5[%c0_26, %c0_27] : memref<32x130xf32, #tpu.memory_space<vmem>>, vector<32x130xf32>
    %c1_28 = arith.constant 1 : index
    %c0_29 = arith.constant 0 : index
    %c0_30 = arith.constant 0 : index
    %c0_31 = arith.constant 0 : index
    %30 = vector.load %arg1[%c1_28, %c0_29, %c0_30, %c0_31] : memref<2x3x32x32xf32, #tpu.memory_space<vmem>>, vector<1x1x32x32xf32>
    %31 = vector.shape_cast %30 : vector<1x1x32x32xf32> to vector<32x32xf32>
    %32 = vector.extract_strided_slice %29 {offsets = [0, 0], sizes = [32, 128], strides = [1, 1]} : vector<32x130xf32> to vector<32x128xf32>
    %cst_32 = arith.constant dense<0.000000e+00> : vector<32x128xf32>
    %33 = tpu.matmul %31, %32, %cst_32 {dimension_numbers = #tpu.dot_dimension_numbers<[1], [0], [0], [1], [0, 0, 1, 1], [], []>} : vector<32x32xf32>, vector<32x128xf32>, vector<32x128xf32> -> vector<32x128xf32>
    %c1_33 = arith.constant 1 : index
    %c1_34 = arith.constant 1 : index
    %c0_35 = arith.constant 0 : index
    %c0_36 = arith.constant 0 : index
    %34 = vector.load %arg1[%c1_33, %c1_34, %c0_35, %c0_36] : memref<2x3x32x32xf32, #tpu.memory_space<vmem>>, vector<1x1x32x32xf32>
    %35 = vector.shape_cast %34 : vector<1x1x32x32xf32> to vector<32x32xf32>
    %36 = vector.extract_strided_slice %29 {offsets = [0, 1], sizes = [32, 128], strides = [1, 1]} : vector<32x130xf32> to vector<32x128xf32>
    %cst_37 = arith.constant dense<0.000000e+00> : vector<32x128xf32>
    %37 = tpu.matmul %35, %36, %cst_37 {dimension_numbers = #tpu.dot_dimension_numbers<[1], [0], [0], [1], [0, 0, 1, 1], [], []>} : vector<32x32xf32>, vector<32x128xf32>, vector<32x128xf32> -> vector<32x128xf32>
    %38 = arith.addf %33, %37 : vector<32x128xf32>
    %c1_38 = arith.constant 1 : index
    %c2_39 = arith.constant 2 : index
    %c0_40 = arith.constant 0 : index
    %c0_41 = arith.constant 0 : index
    %39 = vector.load %arg1[%c1_38, %c2_39, %c0_40, %c0_41] : memref<2x3x32x32xf32, #tpu.memory_space<vmem>>, vector<1x1x32x32xf32>
    %40 = vector.shape_cast %39 : vector<1x1x32x32xf32> to vector<32x32xf32>
    %41 = vector.extract_strided_slice %29 {offsets = [0, 2], sizes = [32, 128], strides = [1, 1]} : vector<32x130xf32> to vector<32x128xf32>
    %cst_42 = arith.constant dense<0.000000e+00> : vector<32x128xf32>
    %42 = tpu.matmul %40, %41, %cst_42 {dimension_numbers = #tpu.dot_dimension_numbers<[1], [0], [0], [1], [0, 0, 1, 1], [], []>} : vector<32x32xf32>, vector<32x128xf32>, vector<32x128xf32> -> vector<32x128xf32>
    %43 = arith.addf %38, %42 : vector<32x128xf32>
    %c1_43 = arith.constant 1 : index
    %c0_44 = arith.constant 0 : index
    %c0_45 = arith.constant 0 : index
    %44 = vector.load %arg2[%c1_43, %c0_44, %c0_45] : memref<2x32x1xf32, #tpu.memory_space<vmem>>, vector<1x32x1xf32>
    %45 = vector.shape_cast %44 : vector<1x32x1xf32> to vector<32x1xf32>
    %46 = vector.broadcast %45 : vector<32x1xf32> to vector<32x128xf32>
    %47 = arith.mulf %43, %46 : vector<32x128xf32>
    %c1_46 = arith.constant 1 : index
    %c0_47 = arith.constant 0 : index
    %c0_48 = arith.constant 0 : index
    %48 = vector.load %arg3[%c1_46, %c0_47, %c0_48] : memref<2x32x1xf32, #tpu.memory_space<vmem>>, vector<1x32x1xf32>
    %49 = vector.shape_cast %48 : vector<1x32x1xf32> to vector<32x1xf32>
    %50 = vector.broadcast %49 : vector<32x1xf32> to vector<32x128xf32>
    %51 = arith.addf %47, %50 : vector<32x128xf32>
    %cst_49 = arith.constant 0.000000e+00 : f32
    %52 = vector.broadcast %cst_49 : f32 to vector<32x128xf32>
    %53 = arith.maximumf %51, %52 : vector<32x128xf32>
    %c0_50 = arith.constant 0 : index
    %c0_51 = arith.constant 0 : index
    %c0_52 = arith.constant 0 : index
    %54 = vector.load %arg4[%c0_50, %c0_51, %c0_52] : memref<2x32x128xf32, #tpu.memory_space<vmem>>, vector<1x32x128xf32>
    %55 = vector.shape_cast %54 : vector<1x32x128xf32> to vector<32x128xf32>
    %56 = vector.shape_cast %53 : vector<32x128xf32> to vector<1x32x128xf32>
    tpu.vector_store %arg4[%c0_50, %c0_51, %c0_52], %56 {strides = array<i32>} : memref<2x32x128xf32, #tpu.memory_space<vmem>>, vector<1x32x128xf32>,
    %c1_53 = arith.constant 1 : index
    %c0_54 = arith.constant 0 : index
    %c0_55 = arith.constant 0 : index
    %57 = vector.load %arg0[%c1_53, %c0_54, %c0_55] : memref<2x32x130xf32, #tpu.memory_space<vmem>>, vector<1x32x130xf32>
    %58 = vector.shape_cast %57 : vector<1x32x130xf32> to vector<32x130xf32>
    %c0_56 = arith.constant 0 : index
    %c0_57 = arith.constant 0 : index
    %c0_58 = arith.constant 0 : index
    %c0_59 = arith.constant 0 : index
    %59 = vector.load %arg1[%c0_56, %c0_57, %c0_58, %c0_59] : memref<2x3x32x32xf32, #tpu.memory_space<vmem>>, vector<1x1x32x32xf32>
    %60 = vector.shape_cast %59 : vector<1x1x32x32xf32> to vector<32x32xf32>
    %61 = vector.extract_strided_slice %58 {offsets = [0, 0], sizes = [32, 128], strides = [1, 1]} : vector<32x130xf32> to vector<32x128xf32>
    %cst_60 = arith.constant dense<0.000000e+00> : vector<32x128xf32>
    %62 = tpu.matmul %60, %61, %cst_60 {dimension_numbers = #tpu.dot_dimension_numbers<[1], [0], [0], [1], [0, 0, 1, 1], [], []>} : vector<32x32xf32>, vector<32x128xf32>, vector<32x128xf32> -> vector<32x128xf32>
    %c0_61 = arith.constant 0 : index
    %c1_62 = arith.constant 1 : index
    %c0_63 = arith.constant 0 : index
    %c0_64 = arith.constant 0 : index
    %63 = vector.load %arg1[%c0_61, %c1_62, %c0_63, %c0_64] : memref<2x3x32x32xf32, #tpu.memory_space<vmem>>, vector<1x1x32x32xf32>
    %64 = vector.shape_cast %63 : vector<1x1x32x32xf32> to vector<32x32xf32>
    %65 = vector.extract_strided_slice %58 {offsets = [0, 1], sizes = [32, 128], strides = [1, 1]} : vector<32x130xf32> to vector<32x128xf32>
    %cst_65 = arith.constant dense<0.000000e+00> : vector<32x128xf32>
    %66 = tpu.matmul %64, %65, %cst_65 {dimension_numbers = #tpu.dot_dimension_numbers<[1], [0], [0], [1], [0, 0, 1, 1], [], []>} : vector<32x32xf32>, vector<32x128xf32>, vector<32x128xf32> -> vector<32x128xf32>
    %67 = arith.addf %62, %66 : vector<32x128xf32>
    %c0_66 = arith.constant 0 : index
    %c2_67 = arith.constant 2 : index
    %c0_68 = arith.constant 0 : index
    %c0_69 = arith.constant 0 : index
    %68 = vector.load %arg1[%c0_66, %c2_67, %c0_68, %c0_69] : memref<2x3x32x32xf32, #tpu.memory_space<vmem>>, vector<1x1x32x32xf32>
    %69 = vector.shape_cast %68 : vector<1x1x32x32xf32> to vector<32x32xf32>
    %70 = vector.extract_strided_slice %58 {offsets = [0, 2], sizes = [32, 128], strides = [1, 1]} : vector<32x130xf32> to vector<32x128xf32>
    %cst_70 = arith.constant dense<0.000000e+00> : vector<32x128xf32>
    %71 = tpu.matmul %69, %70, %cst_70 {dimension_numbers = #tpu.dot_dimension_numbers<[1], [0], [0], [1], [0, 0, 1, 1], [], []>} : vector<32x32xf32>, vector<32x128xf32>, vector<32x128xf32> -> vector<32x128xf32>
    %72 = arith.addf %67, %71 : vector<32x128xf32>
    %c0_71 = arith.constant 0 : index
    %c0_72 = arith.constant 0 : index
    %c0_73 = arith.constant 0 : index
    %73 = vector.load %arg2[%c0_71, %c0_72, %c0_73] : memref<2x32x1xf32, #tpu.memory_space<vmem>>, vector<1x32x1xf32>
    %74 = vector.shape_cast %73 : vector<1x32x1xf32> to vector<32x1xf32>
    %75 = vector.broadcast %74 : vector<32x1xf32> to vector<32x128xf32>
    %76 = arith.mulf %72, %75 : vector<32x128xf32>
    %c0_74 = arith.constant 0 : index
    %c0_75 = arith.constant 0 : index
    %c0_76 = arith.constant 0 : index
    %77 = vector.load %arg3[%c0_74, %c0_75, %c0_76] : memref<2x32x1xf32, #tpu.memory_space<vmem>>, vector<1x32x1xf32>
    %78 = vector.shape_cast %77 : vector<1x32x1xf32> to vector<32x1xf32>
    %79 = vector.broadcast %78 : vector<32x1xf32> to vector<32x128xf32>
    %80 = arith.addf %76, %79 : vector<32x128xf32>
    %cst_77 = arith.constant 0.000000e+00 : f32
    %81 = vector.broadcast %cst_77 : f32 to vector<32x128xf32>
    %82 = arith.maximumf %80, %81 : vector<32x128xf32>
    %c0_78 = arith.constant 0 : index
    %c1_79 = arith.constant 1 : index
    %83 = vector.load %arg5[%c0_78, %c1_79] : memref<32x130xf32, #tpu.memory_space<vmem>>, vector<32x128xf32>
    tpu.vector_store %arg5[%c0_78, %c1_79], %82 {strides = array<i32>} : memref<32x130xf32, #tpu.memory_space<vmem>>, vector<32x128xf32>,
    %c0_80 = arith.constant 0 : index
    %c0_81 = arith.constant 0 : index
    %84 = vector.load %arg5[%c0_80, %c0_81] : memref<32x130xf32, #tpu.memory_space<vmem>>, vector<32x130xf32>
    %c1_82 = arith.constant 1 : index
    %c0_83 = arith.constant 0 : index
    %c0_84 = arith.constant 0 : index
    %c0_85 = arith.constant 0 : index
    %85 = vector.load %arg1[%c1_82, %c0_83, %c0_84, %c0_85] : memref<2x3x32x32xf32, #tpu.memory_space<vmem>>, vector<1x1x32x32xf32>
    %86 = vector.shape_cast %85 : vector<1x1x32x32xf32> to vector<32x32xf32>
    %87 = vector.extract_strided_slice %84 {offsets = [0, 0], sizes = [32, 128], strides = [1, 1]} : vector<32x130xf32> to vector<32x128xf32>
    %cst_86 = arith.constant dense<0.000000e+00> : vector<32x128xf32>
    %88 = tpu.matmul %86, %87, %cst_86 {dimension_numbers = #tpu.dot_dimension_numbers<[1], [0], [0], [1], [0, 0, 1, 1], [], []>} : vector<32x32xf32>, vector<32x128xf32>, vector<32x128xf32> -> vector<32x128xf32>
    %c1_87 = arith.constant 1 : index
    %c1_88 = arith.constant 1 : index
    %c0_89 = arith.constant 0 : index
    %c0_90 = arith.constant 0 : index
    %89 = vector.load %arg1[%c1_87, %c1_88, %c0_89, %c0_90] : memref<2x3x32x32xf32, #tpu.memory_space<vmem>>, vector<1x1x32x32xf32>
    %90 = vector.shape_cast %89 : vector<1x1x32x32xf32> to vector<32x32xf32>
    %91 = vector.extract_strided_slice %84 {offsets = [0, 1], sizes = [32, 128], strides = [1, 1]} : vector<32x130xf32> to vector<32x128xf32>
    %cst_91 = arith.constant dense<0.000000e+00> : vector<32x128xf32>
    %92 = tpu.matmul %90, %91, %cst_91 {dimension_numbers = #tpu.dot_dimension_numbers<[1], [0], [0], [1], [0, 0, 1, 1], [], []>} : vector<32x32xf32>, vector<32x128xf32>, vector<32x128xf32> -> vector<32x128xf32>
    %93 = arith.addf %88, %92 : vector<32x128xf32>
    %c1_92 = arith.constant 1 : index
    %c2_93 = arith.constant 2 : index
    %c0_94 = arith.constant 0 : index
    %c0_95 = arith.constant 0 : index
    %94 = vector.load %arg1[%c1_92, %c2_93, %c0_94, %c0_95] : memref<2x3x32x32xf32, #tpu.memory_space<vmem>>, vector<1x1x32x32xf32>
    %95 = vector.shape_cast %94 : vector<1x1x32x32xf32> to vector<32x32xf32>
    %96 = vector.extract_strided_slice %84 {offsets = [0, 2], sizes = [32, 128], strides = [1, 1]} : vector<32x130xf32> to vector<32x128xf32>
    %cst_96 = arith.constant dense<0.000000e+00> : vector<32x128xf32>
    %97 = tpu.matmul %95, %96, %cst_96 {dimension_numbers = #tpu.dot_dimension_numbers<[1], [0], [0], [1], [0, 0, 1, 1], [], []>} : vector<32x32xf32>, vector<32x128xf32>, vector<32x128xf32> -> vector<32x128xf32>
    %98 = arith.addf %93, %97 : vector<32x128xf32>
    %c1_97 = arith.constant 1 : index
    %c0_98 = arith.constant 0 : index
    %c0_99 = arith.constant 0 : index
    %99 = vector.load %arg2[%c1_97, %c0_98, %c0_99] : memref<2x32x1xf32, #tpu.memory_space<vmem>>, vector<1x32x1xf32>
    %100 = vector.shape_cast %99 : vector<1x32x1xf32> to vector<32x1xf32>
    %101 = vector.broadcast %100 : vector<32x1xf32> to vector<32x128xf32>
    %102 = arith.mulf %98, %101 : vector<32x128xf32>
    %c1_100 = arith.constant 1 : index
    %c0_101 = arith.constant 0 : index
    %c0_102 = arith.constant 0 : index
    %103 = vector.load %arg3[%c1_100, %c0_101, %c0_102] : memref<2x32x1xf32, #tpu.memory_space<vmem>>, vector<1x32x1xf32>
    %104 = vector.shape_cast %103 : vector<1x32x1xf32> to vector<32x1xf32>
    %105 = vector.broadcast %104 : vector<32x1xf32> to vector<32x128xf32>
    %106 = arith.addf %102, %105 : vector<32x128xf32>
    %cst_103 = arith.constant 0.000000e+00 : f32
    %107 = vector.broadcast %cst_103 : f32 to vector<32x128xf32>
    %108 = arith.maximumf %106, %107 : vector<32x128xf32>
    %c1_104 = arith.constant 1 : index
    %c0_105 = arith.constant 0 : index
    %c0_106 = arith.constant 0 : index
    %109 = vector.load %arg4[%c1_104, %c0_105, %c0_106] : memref<2x32x128xf32, #tpu.memory_space<vmem>>, vector<1x32x128xf32>
    %110 = vector.shape_cast %109 : vector<1x32x128xf32> to vector<32x128xf32>
    %111 = vector.shape_cast %108 : vector<32x128xf32> to vector<1x32x128xf32>
    tpu.vector_store %arg4[%c1_104, %c0_105, %c0_106], %111 {strides = array<i32>} : memref<2x32x128xf32, #tpu.memory_space<vmem>>, vector<1x32x128xf32>,
    return
  }
}

</mosaic_0001>

<llo_original>
// kernel: convnet_forward.1
$region0: #{convnet_forward.1}
  #allocation0 [shape = 'u32[]', space=smem, size = 0x4, offset = 0x4, fixed_abs, tag = 'smem constant byte address 0x4 - core index']
  #allocation1 [shape = 'u32[144,128]{1,0:T(1,128)}', space=vmem, size = 0x12000, scoped, tag = 'internal scratch']
  #allocation2 [shape = 'f32[32,130]{1,0:T(8,128)}', space=vmem, size = 0x8000, scoped, tag = 'scratch operand']
  %s0 = inlined_call_operand.vmem [shape: f32[2,32,130], index: 0, kind: input, shape index: {}]
  %s1 = inlined_call_operand.vmem [shape: f32[2,3,32,32], index: 1, kind: input, shape index: {}]
  %s2 = inlined_call_operand.vmem [shape: f32[2,32,1], index: 2, kind: input, shape index: {}]
  %s3 = inlined_call_operand.vmem [shape: f32[2,32,1], index: 3, kind: input, shape index: {}]
  %s4 = inlined_call_operand.vmem [shape: f32[2,32,128], index: 4, kind: output, shape index: {}]
  %s5 = sld [smem:[#allocation0]]
  $region26: #{convnet_forward.1} parent=0
    _
  %s7 = ssub.s32 1, %s5
  %s8 = scalar_select 0, %s7, %s5
  // Predicated region
  $region2: #{convnet_forward.1} parent=0 // pred_check
    _
  $region3: #{convnet_forward.1} parent=0 // pred_check_branch
    %10 = sbr.rel (0) target = $region5
  $region4: #{convnet_forward.1} parent=0 // pred_region
    _
  $region5: #{convnet_forward.1} parent=0 // pred_fallthru
    _
  // Predicated region
  $region6: #{convnet_forward.1} parent=0 // pred_check
    _
  $region7: #{convnet_forward.1} parent=0 // pred_check_branch
    %12 = sbr.rel (0) target = $region9
  $region8: #{convnet_forward.1} parent=0 // pred_region
    _
  $region9: #{convnet_forward.1} parent=0 // pred_fallthru
    _
  // Predicated region
  $region10: #{convnet_forward.1} parent=0 // pred_check
    _
  $region11: #{convnet_forward.1} parent=0 // pred_check_branch
    %14 = sbr.rel (0) target = $region13
  $region12: #{convnet_forward.1} parent=0 // pred_region
    _
  $region13: #{convnet_forward.1} parent=0 // pred_fallthru
    _
  // Predicated region
  $region14: #{convnet_forward.1} parent=0 // pred_check
    _
  $region15: #{convnet_forward.1} parent=0 // pred_check_branch
    %16 = sbr.rel (0) target = $region17
  $region16: #{convnet_forward.1} parent=0 // pred_region
    _
  $region17: #{convnet_forward.1} parent=0 // pred_fallthru
    _
  %17 = vst [vmem:[#allocation2] sm:$0xff] 0.0
  %vm18 = vcmask 15360
  %19 = vst.msk [vmem:[#allocation2 + $0x8] sm:$0xff] %vm18, 0.0
  %20 = vst [vmem:[#allocation2 + $0x10] sm:$0xff] 0.0
  %21 = vst.msk [vmem:[#allocation2 + $0x18] sm:$0xff] %vm18, 0.0
  %22 = vst [vmem:[#allocation2 + $0x20] sm:$0xff] 0.0
  %23 = vst.msk [vmem:[#allocation2 + $0x28] sm:$0xff] %vm18, 0.0
  %24 = vst [vmem:[#allocation2 + $0x30] sm:$0xff] 0.0
  %25 = vst.msk [vmem:[#allocation2 + $0x38] sm:$0xff] %vm18, 0.0
  %v26 = vld [vmem:[%s0] sm:$0xff]
  %v27 = vld [vmem:[%s0 + $0x8] sm:$0xff]
  %v28 = vld [vmem:[%s0 + $0x10] sm:$0xff]
  %v29 = vld [vmem:[%s0 + $0x18] sm:$0xff]
  %v30 = vld [vmem:[%s0 + $0x20] sm:$0xff]
  %v31 = vld [vmem:[%s0 + $0x28] sm:$0xff]
  %v32 = vld [vmem:[%s0 + $0x30] sm:$0xff]
  %v33 = vld [vmem:[%s0 + $0x38] sm:$0xff]
  %v34 = vld [vmem:[%s1] sm:$0xff]
  %v35 = vld [vmem:[%s1 + $0x8] sm:$0xff]
  %v36 = vld [vmem:[%s1 + $0x10] sm:$0xff]
  %v37 = vld [vmem:[%s1 + $0x18] sm:$0xff]
  %s38 = scalar_lea.vmem %s1, 32
  %v39 = vld [vmem:[%s38] sm:$0xff]
  %v40 = vld [vmem:[%s38 + $0x8] sm:$0xff]
  %v41 = vld [vmem:[%s38 + $0x10] sm:$0xff]
  %v42 = vld [vmem:[%s38 + $0x18] sm:$0xff]
  %51 = vrot.lane.b32.xlu0 %v26, 127
  %v52 = vpop.permute.xlu0 %51
  %53 = vrot.lane.b32.xlu0 %v27, 127
  %v54 = vpop.permute.xlu0 %53
  %55 = vrot.lane.b32.xlu0 %v28, 127
  %v56 = vpop.permute.xlu0 %55
  %57 = vrot.lane.b32.xlu0 %v29, 127
  %v58 = vpop.permute.xlu0 %57
  %59 = vrot.lane.b32.xlu0 %v30, 127
  %v60 = vpop.permute.xlu0 %59
  %61 = vrot.lane.b32.xlu0 %v31, 127
  %v62 = vpop.permute.xlu0 %61
  %63 = vrot.lane.b32.xlu0 %v32, 127
  %v64 = vpop.permute.xlu0 %63
  %65 = vrot.lane.b32.xlu0 %v33, 127
  %v66 = vpop.permute.xlu0 %65
  %vm67 = vcmask 1039360
  %v68 = vsel %vm67, %v52, %v54
  %v69 = vsel %vm67, %v56, %v58
  %v70 = vsel %vm67, %v60, %v62
  %v71 = vsel %vm67, %v64, %v66
  %vm76 = vcmask 261120
  %v78 = vsel %vm76, %v39, 0
  %v81 = vsel %vm76, %v40, 0
  %v84 = vsel %vm76, %v41, 0
  %v87 = vsel %vm76, %v42, 0
  %89 = vmatprep.subr.mxu0 0.0
  %90 = vmatpush1.msra.mxu0 %v68
  %91 = vmatprep.subr.mxu0 0.0
  %92 = vmatpush1.msra.mxu0 %v69
  %93 = vmatprep.subr.mxu0 0.0
  %94 = vmatpush1.msra.mxu0 %v70
  %95 = vmatprep.subr.mxu0 0.0
  %96 = vmatpush1.msra.mxu0 %v71
  %97 = vmatprep.subr.mxu0 0.0
  %98 = vmatpush1.msra.mxu0 0.0
  %99 = vmatprep.subr.mxu0 0.0
  %100 = vmatpush1.msra.mxu0 0.0
  %101 = vmatprep.subr.mxu0 0.0
  %102 = vmatpush1.msra.mxu0 0.0
  %103 = vmatprep.subr.mxu0 0.0
  %104 = vmatpush1.msra.mxu0 0.0
  %105 = vmatprep.subr.mxu0 0.0
  %106 = vmatpush1.msra.mxu0 0.0
  %107 = vmatprep.subr.mxu0 0.0
  %108 = vmatpush1.msra.mxu0 0.0
  %109 = vmatprep.subr.mxu0 0.0
  %110 = vmatpush1.msra.mxu0 0.0
  %111 = vmatprep.subr.mxu0 0.0
  %112 = vmatpush1.msra.mxu0 0.0
  %113 = vmatprep.subr.mxu0 0.0
  %114 = vmatpush1.msra.mxu0 0.0
  %115 = vmatprep.subr.mxu0 0.0
  %116 = vmatpush1.msra.mxu0 0.0
  %117 = vmatprep.subr.mxu0 0.0
  %118 = vmatpush1.msra.mxu0 0.0
  %119 = vmatprep.subr.mxu0 0.0
  %120 = vmatpush1.msra.mxu0 0.0
  %121 = vmatprep.subr.mxu0 0.0
  %122 = vmatpush1.msra.mxu0 0.0
  %123 = vmatprep.subr.mxu0 0.0
  %124 = vmatpush1.msra.mxu0 0.0
  %125 = vmatprep.subr.mxu0 0.0
  %126 = vmatpush1.msra.mxu0 0.0
  %127 = vmatprep.subr.mxu0 0.0
  %128 = vmatpush1.msra.mxu0 0.0
  %129 = vmatprep.subr.mxu0 0.0
  %130 = vmatpush1.msra.mxu0 0.0
  %131 = vmatprep.subr.mxu0 0.0
  %132 = vmatpush1.msra.mxu0 0.0
  %133 = vmatprep.subr.mxu0 0.0
  %134 = vmatpush1.msra.mxu0 0.0
  %135 = vmatprep.subr.mxu0 0.0
  %136 = vmatpush1.msra.mxu0 0.0
  %137 = vmatprep.subr.mxu0 0.0
  %138 = vmatpush1.msra.mxu0 0.0
  %139 = vmatprep.subr.mxu0 0.0
  %140 = vmatpush1.msra.mxu0 0.0
  %141 = vmatprep.subr.mxu0 0.0
  %142 = vmatpush1.msra.mxu0 0.0
  %143 = vmatprep.subr.mxu0 0.0
  %144 = vmatpush1.msra.mxu0 0.0
  %145 = vmatprep.subr.mxu0 0.0
  %146 = vmatpush1.msra.mxu0 0.0
  %147 = vmatprep.subr.mxu0 0.0
  %148 = vmatpush1.msra.mxu0 0.0
  %149 = vmatprep.subr.mxu0 0.0
  %150 = vmatpush1.msra.mxu0 0.0
  %151 = vmatprep.subr.mxu0 0.0
  %152 = vmatpush1.msra.mxu0 0.0
  %153 = vmatprep.mubr.f32.mxu0 0.0
  %154 = vmatmul.mubr.f32.gmra.mrb[0].mxu0 %v78
  %v155 = vpop.f32.mrb[0].mxu0
  %v156 = vadd.f32 0.0, %v155
  %v157 = vpop.f32.mrb[0].mxu0
  %158 = vmatprep.mubr.f32.mxu0 0.0
  %159 = vmatmul.mubr.f32.gmra.mrb[0].mxu0 %v81
  %v160 = vpop.f32.mrb[0].mxu0
  %v161 = vadd.f32 0.0, %v160
  %v162 = vpop.f32.mrb[0].mxu0
  %163 = vmatprep.mubr.f32.mxu0 0.0
  %164 = vmatmul.mubr.f32.gmra.mrb[0].mxu0 %v84
  %v165 = vpop.f32.mrb[0].mxu0
  %v166 = vadd.f32 0.0, %v165
  %v167 = vpop.f32.mrb[0].mxu0
  %168 = vmatprep.mubr.f32.mxu0 0.0
  %169 = vmatmul.mubr.f32.gmra.mrb[0].mxu0 %v87
  %v170 = vpop.f32.mrb[0].mxu0
  %v171 = vadd.f32 0.0, %v170
  %v172 = vpop.f32.mrb[0].mxu0
  %173 = vdwg.mxu0
  %v175 = vsel %vm76, %v34, 0
  %v178 = vsel %vm76, %v35, 0
  %v181 = vsel %vm76, %v36, 0
  %v184 = vsel %vm76, %v37, 0
  %186 = vmatprep.subr.mxu0 0.0
  %187 = vmatpush1.msra.mxu0 %v26
  %188 = vmatprep.subr.mxu0 0.0
  %189 = vmatpush1.msra.mxu0 %v28
  %190 = vmatprep.subr.mxu0 0.0
  %191 = vmatpush1.msra.mxu0 %v30
  %192 = vmatprep.subr.mxu0 0.0
  %193 = vmatpush1.msra.mxu0 %v32
  %194 = vmatprep.subr.mxu0 0.0
  %195 = vmatpush1.msra.mxu0 0.0
  %196 = vmatprep.subr.mxu0 0.0
  %197 = vmatpush1.msra.mxu0 0.0
  %198 = vmatprep.subr.mxu0 0.0
  %199 = vmatpush1.msra.mxu0 0.0
  %200 = vmatprep.subr.mxu0 0.0
  %201 = vmatpush1.msra.mxu0 0.0
  %202 = vmatprep.subr.mxu0 0.0
  %203 = vmatpush1.msra.mxu0 0.0
  %204 = vmatprep.subr.mxu0 0.0
  %205 = vmatpush1.msra.mxu0 0.0
  %206 = vmatprep.subr.mxu0 0.0
  %207 = vmatpush1.msra.mxu0 0.0
  %208 = vmatprep.subr.mxu0 0.0
  %209 = vmatpush1.msra.mxu0 0.0
  %210 = vmatprep.subr.mxu0 0.0
  %211 = vmatpush1.msra.mxu0 0.0
  %212 = vmatprep.subr.mxu0 0.0
  %213 = vmatpush1.msra.mxu0 0.0
  %214 = vmatprep.subr.mxu0 0.0
  %215 = vmatpush1.msra.mxu0 0.0
  %216 = vmatprep.subr.mxu0 0.0
  %217 = vmatpush1.msra.mxu0 0.0
  %218 = vmatprep.subr.mxu0 0.0
  %219 = vmatpush1.msra.mxu0 0.0
  %220 = vmatprep.subr.mxu0 0.0
  %221 = vmatpush1.msra.mxu0 0.0
  %222 = vmatprep.subr.mxu0 0.0
  %223 = vmatpush1.msra.mxu0 0.0
  %224 = vmatprep.subr.mxu0 0.0
  %225 = vmatpush1.msra.mxu0 0.0
  %226 = vmatprep.subr.mxu0 0.0
  %227 = vmatpush1.msra.mxu0 0.0
  %228 = vmatprep.subr.mxu0 0.0
  %229 = vmatpush1.msra.mxu0 0.0
  %230 = vmatprep.subr.mxu0 0.0
  %231 = vmatpush1.msra.mxu0 0.0
  %232 = vmatprep.subr.mxu0 0.0
  %233 = vmatpush1.msra.mxu0 0.0
  %234 = vmatprep.subr.mxu0 0.0
  %235 = vmatpush1.msra.mxu0 0.0
  %236 = vmatprep.subr.mxu0 0.0
  %237 = vmatpush1.msra.mxu0 0.0
  %238 = vmatprep.subr.mxu0 0.0
  %239 = vmatpush1.msra.mxu0 0.0
  %240 = vmatprep.subr.mxu0 0.0
  %241 = vmatpush1.msra.mxu0 0.0
  %242 = vmatprep.subr.mxu0 0.0
  %243 = vmatpush1.msra.mxu0 0.0
  %244 = vmatprep.subr.mxu0 0.0
  %245 = vmatpush1.msra.mxu0 0.0
  %246 = vmatprep.subr.mxu0 0.0
  %247 = vmatpush1.msra.mxu0 0.0
  %248 = vmatprep.subr.mxu0 0.0
  %249 = vmatpush1.msra.mxu0 0.0
  %250 = vmatprep.mubr.f32.mxu0 0.0
  %251 = vmatmul.mubr.f32.gmra.mrb[0].mxu0 %v175
  %v252 = vpop.f32.mrb[0].mxu0
  %v253 = vadd.f32 %v156, %v252
  %v254 = vpop.f32.mrb[0].mxu0
  %255 = vmatprep.mubr.f32.mxu0 0.0
  %256 = vmatmul.mubr.f32.gmra.mrb[0].mxu0 %v178
  %v257 = vpop.f32.mrb[0].mxu0
  %v258 = vadd.f32 %v161, %v257
  %v259 = vpop.f32.mrb[0].mxu0
  %260 = vmatprep.mubr.f32.mxu0 0.0
  %261 = vmatmul.mubr.f32.gmra.mrb[0].mxu0 %v181
  %v262 = vpop.f32.mrb[0].mxu0
  %v263 = vadd.f32 %v166, %v262
  %v264 = vpop.f32.mrb[0].mxu0
  %265 = vmatprep.mubr.f32.mxu0 0.0
  %266 = vmatmul.mubr.f32.gmra.mrb[0].mxu0 %v184
  %v267 = vpop.f32.mrb[0].mxu0
  %v268 = vadd.f32 %v171, %v267
  %v269 = vpop.f32.mrb[0].mxu0
  %270 = vdwg.mxu0
  %s271 = scalar_lea.vmem %s1, 64
  %v272 = vld [vmem:[%s271] sm:$0xff]
  %v273 = vld [vmem:[%s271 + $0x8] sm:$0xff]
  %v274 = vld [vmem:[%s271 + $0x10] sm:$0xff]
  %v275 = vld [vmem:[%s271 + $0x18] sm:$0xff]
  %276 = vrot.lane.b32.xlu0 %v26, 126
  %v277 = vpop.permute.xlu0 %276
  %278 = vrot.lane.b32.xlu0 %v27, 126
  %v279 = vpop.permute.xlu0 %278
  %280 = vrot.lane.b32.xlu0 %v28, 126
  %v281 = vpop.permute.xlu0 %280
  %282 = vrot.lane.b32.xlu0 %v29, 126
  %v283 = vpop.permute.xlu0 %282
  %284 = vrot.lane.b32.xlu0 %v30, 126
  %v285 = vpop.permute.xlu0 %284
  %286 = vrot.lane.b32.xlu0 %v31, 126
  %v287 = vpop.permute.xlu0 %286
  %288 = vrot.lane.b32.xlu0 %v32, 126
  %v289 = vpop.permute.xlu0 %288
  %290 = vrot.lane.b32.xlu0 %v33, 126
  %v291 = vpop.permute.xlu0 %290
  %vm292 = vcmask 1031168
  %v293 = vsel %vm292, %v277, %v279
  %v294 = vsel %vm292, %v281, %v283
  %v295 = vsel %vm292, %v285, %v287
  %v296 = vsel %vm292, %v289, %v291
  %v302 = vsel %vm76, %v272, 0
  %v305 = vsel %vm76, %v273, 0
  %v308 = vsel %vm76, %v274, 0
  %v311 = vsel %vm76, %v275, 0
  %313 = vmatprep.subr.mxu0 0.0
  %314 = vmatpush1.msra.mxu0 %v293
  %315 = vmatprep.subr.mxu0 0.0
  %316 = vmatpush1.msra.mxu0 %v294
  %317 = vmatprep.subr.mxu0 0.0
  %318 = vmatpush1.msra.mxu0 %v295
  %319 = vmatprep.subr.mxu0 0.0
  %320 = vmatpush1.msra.mxu0 %v296
  %321 = vmatprep.subr.mxu0 0.0
  %322 = vmatpush1.msra.mxu0 0.0
  %323 = vmatprep.subr.mxu0 0.0
  %324 = vmatpush1.msra.mxu0 0.0
  %325 = vmatprep.subr.mxu0 0.0
  %326 = vmatpush1.msra.mxu0 0.0
  %327 = vmatprep.subr.mxu0 0.0
  %328 = vmatpush1.msra.mxu0 0.0
  %329 = vmatprep.subr.mxu0 0.0
  %330 = vmatpush1.msra.mxu0 0.0
  %331 = vmatprep.subr.mxu0 0.0
  %332 = vmatpush1.msra.mxu0 0.0
  %333 = vmatprep.subr.mxu0 0.0
  %334 = vmatpush1.msra.mxu0 0.0
  %335 = vmatprep.subr.mxu0 0.0
  %336 = vmatpush1.msra.mxu0 0.0
  %337 = vmatprep.subr.mxu0 0.0
  %338 = vmatpush1.msra.mxu0 0.0
  %339 = vmatprep.subr.mxu0 0.0
  %340 = vmatpush1.msra.mxu0 0.0
  %341 = vmatprep.subr.mxu0 0.0
  %342 = vmatpush1.msra.mxu0 0.0
  %343 = vmatprep.subr.mxu0 0.0
  %344 = vmatpush1.msra.mxu0 0.0
  %345 = vmatprep.subr.mxu0 0.0
  %346 = vmatpush1.msra.mxu0 0.0
  %347 = vmatprep.subr.mxu0 0.0
  %348 = vmatpush1.msra.mxu0 0.0
  %349 = vmatprep.subr.mxu0 0.0
  %350 = vmatpush1.msra.mxu0 0.0
  %351 = vmatprep.subr.mxu0 0.0
  %352 = vmatpush1.msra.mxu0 0.0
  %353 = vmatprep.subr.mxu0 0.0
  %354 = vmatpush1.msra.mxu0 0.0
  %355 = vmatprep.subr.mxu0 0.0
  %356 = vmatpush1.msra.mxu0 0.0
  %357 = vmatprep.subr.mxu0 0.0
  %358 = vmatpush1.msra.mxu0 0.0
  %359 = vmatprep.subr.mxu0 0.0
  %360 = vmatpush1.msra.mxu0 0.0
  %361 = vmatprep.subr.mxu0 0.0
  %362 = vmatpush1.msra.mxu0 0.0
  %363 = vmatprep.subr.mxu0 0.0
  %364 = vmatpush1.msra.mxu0 0.0
  %365 = vmatprep.subr.mxu0 0.0
  %366 = vmatpush1.msra.mxu0 0.0
  %367 = vmatprep.subr.mxu0 0.0
  %368 = vmatpush1.msra.mxu0 0.0
  %369 = vmatprep.subr.mxu0 0.0
  %370 = vmatpush1.msra.mxu0 0.0
  %371 = vmatprep.subr.mxu0 0.0
  %372 = vmatpush1.msra.mxu0 0.0
  %373 = vmatprep.subr.mxu0 0.0
  %374 = vmatpush1.msra.mxu0 0.0
  %375 = vmatprep.subr.mxu0 0.0
  %376 = vmatpush1.msra.mxu0 0.0
  %377 = vmatprep.mubr.f32.mxu0 0.0
  %378 = vmatmul.mubr.f32.gmra.mrb[0].mxu0 %v302
  %v379 = vpop.f32.mrb[0].mxu0
  %v380 = vadd.f32 0.0, %v379
  %v381 = vpop.f32.mrb[0].mxu0
  %382 = vmatprep.mubr.f32.mxu0 0.0
  %383 = vmatmul.mubr.f32.gmra.mrb[0].mxu0 %v305
  %v384 = vpop.f32.mrb[0].mxu0
  %v385 = vadd.f32 0.0, %v384
  %v386 = vpop.f32.mrb[0].mxu0
  %387 = vmatprep.mubr.f32.mxu0 0.0
  %388 = vmatmul.mubr.f32.gmra.mrb[0].mxu0 %v308
  %v389 = vpop.f32.mrb[0].mxu0
  %v390 = vadd.f32 0.0, %v389
  %v391 = vpop.f32.mrb[0].mxu0
  %392 = vmatprep.mubr.f32.mxu0 0.0
  %393 = vmatmul.mubr.f32.gmra.mrb[0].mxu0 %v311
  %v394 = vpop.f32.mrb[0].mxu0
  %v395 = vadd.f32 0.0, %v394
  %v396 = vpop.f32.mrb[0].mxu0
  %397 = vdwg.mxu0
  %v398 = vadd.f32 %v253, %v380
  %v399 = vadd.f32 %v258, %v385
  %v400 = vadd.f32 %v263, %v390
  %v401 = vadd.f32 %v268, %v395
  %v402 = vld [vmem:[%s2] sm:$0xff]
  %v403 = vld [vmem:[%s2 + $0x8] sm:$0xff]
  %v404 = vld [vmem:[%s2 + $0x10] sm:$0xff]
  %v405 = vld [vmem:[%s2 + $0x18] sm:$0xff]
  %407 = vset.pattern.permute.xlu0 0
  %408 = vperm.xlu0 %407, %v402
  %v409 = vpop.permute.xlu0 %408
  %412 = vset.pattern.permute.xlu0 0
  %413 = vperm.xlu0 %412, %v403
  %v414 = vpop.permute.xlu0 %413
  %417 = vset.pattern.permute.xlu0 0
  %418 = vperm.xlu0 %417, %v404
  %v419 = vpop.permute.xlu0 %418
  %422 = vset.pattern.permute.xlu0 0
  %423 = vperm.xlu0 %422, %v405
  %v424 = vpop.permute.xlu0 %423
  %v426 = vmul.f32 %v398, %v409
  %v427 = vmul.f32 %v399, %v414
  %v428 = vmul.f32 %v400, %v419
  %v429 = vmul.f32 %v401, %v424
  %v430 = vld [vmem:[%s3] sm:$0xff]
  %v431 = vld [vmem:[%s3 + $0x8] sm:$0xff]
  %v432 = vld [vmem:[%s3 + $0x10] sm:$0xff]
  %v433 = vld [vmem:[%s3 + $0x18] sm:$0xff]
  %435 = vset.pattern.permute.xlu0 0
  %436 = vperm.xlu0 %435, %v430
  %v437 = vpop.permute.xlu0 %436
  %440 = vset.pattern.permute.xlu0 0
  %441 = vperm.xlu0 %440, %v431
  %v442 = vpop.permute.xlu0 %441
  %445 = vset.pattern.permute.xlu0 0
  %446 = vperm.xlu0 %445, %v432
  %v447 = vpop.permute.xlu0 %446
  %450 = vset.pattern.permute.xlu0 0
  %451 = vperm.xlu0 %450, %v433
  %v452 = vpop.permute.xlu0 %451
  %v454 = vadd.f32 %v426, %v437
  %v455 = vadd.f32 %v427, %v442
  %v456 = vadd.f32 %v428, %v447
  %v457 = vadd.f32 %v429, %v452
  %v458 = vmax.f32 %v454, 0.0
  %v459 = vmax.f32 %v455, 0.0
  %v460 = vmax.f32 %v456, 0.0
  %v461 = vmax.f32 %v457, 0.0
  %466 = vrot.lane.b32.xlu0 %v458, 1
  %v467 = vpop.permute.xlu0 %466
  %468 = vrot.lane.b32.xlu0 %v459, 1
  %v469 = vpop.permute.xlu0 %468
  %470 = vrot.lane.b32.xlu0 %v460, 1
  %v471 = vpop.permute.xlu0 %470
  %472 = vrot.lane.b32.xlu0 %v461, 1
  %v473 = vpop.permute.xlu0 %472
  %vm478 = vcmask 1047560
  %479 = vst.msk [vmem:[#allocation2] sm:$0xff] %vm478, %v467
  %vm480 = vcmask 7168
  %481 = vst.msk [vmem:[#allocation2 + $0x8] sm:$0xff] %vm480, %v467
  %482 = vst.msk [vmem:[#allocation2 + $0x10] sm:$0xff] %vm478, %v469
  %483 = vst.msk [vmem:[#allocation2 + $0x18] sm:$0xff] %vm480, %v469
  %484 = vst.msk [vmem:[#allocation2 + $0x20] sm:$0xff] %vm478, %v471
  %485 = vst.msk [vmem:[#allocation2 + $0x28] sm:$0xff] %vm480, %v471
  %486 = vst.msk [vmem:[#allocation2 + $0x30] sm:$0xff] %vm478, %v473
  %487 = vst.msk [vmem:[#allocation2 + $0x38] sm:$0xff] %vm480, %v473
  %v488 = vld [vmem:[#allocation2] sm:$0xff]
  %v489 = vld [vmem:[#allocation2 + $0x8] sm:$0xff]
  %v490 = vld [vmem:[#allocation2 + $0x10] sm:$0xff]
  %v491 = vld [vmem:[#allocation2 + $0x18] sm:$0xff]
  %v492 = vld [vmem:[#allocation2 + $0x20] sm:$0xff]
  %v493 = vld [vmem:[#allocation2 + $0x28] sm:$0xff]
  %v494 = vld [vmem:[#allocation2 + $0x30] sm:$0xff]
  %v495 = vld [vmem:[#allocation2 + $0x38] sm:$0xff]
  %s496 = scalar_lea.vmem %s1, 96
  %v497 = vld [vmem:[%s496] sm:$0xff]
  %v498 = vld [vmem:[%s496 + $0x8] sm:$0xff]
  %v499 = vld [vmem:[%s496 + $0x10] sm:$0xff]
  %v500 = vld [vmem:[%s496 + $0x18] sm:$0xff]
  %s501 = scalar_lea.vmem %s1, 128
  %v502 = vld [vmem:[%s501] sm:$0xff]
  %v503 = vld [vmem:[%s501 + $0x8] sm:$0xff]
  %v504 = vld [vmem:[%s501 + $0x10] sm:$0xff]
  %v505 = vld [vmem:[%s501 + $0x18] sm:$0xff]
  %514 = vrot.lane.b32.xlu0 %v488, 127
  %v515 = vpop.permute.xlu0 %514
  %516 = vrot.lane.b32.xlu0 %v489, 127
  %v517 = vpop.permute.xlu0 %516
  %518 = vrot.lane.b32.xlu0 %v490, 127
  %v519 = vpop.permute.xlu0 %518
  %520 = vrot.lane.b32.xlu0 %v491, 127
  %v521 = vpop.permute.xlu0 %520
  %522 = vrot.lane.b32.xlu0 %v492, 127
  %v523 = vpop.permute.xlu0 %522
  %524 = vrot.lane.b32.xlu0 %v493, 127
  %v525 = vpop.permute.xlu0 %524
  %526 = vrot.lane.b32.xlu0 %v494, 127
  %v527 = vpop.permute.xlu0 %526
  %528 = vrot.lane.b32.xlu0 %v495, 127
  %v529 = vpop.permute.xlu0 %528
  %v530 = vsel %vm67, %v515, %v517
  %v531 = vsel %vm67, %v519, %v521
  %v532 = vsel %vm67, %v523, %v525
  %v533 = vsel %vm67, %v527, %v529
  %v539 = vsel %vm76, %v502, 0
  %v542 = vsel %vm76, %v503, 0
  %v545 = vsel %vm76, %v504, 0
  %v548 = vsel %vm76, %v505, 0
  %550 = vmatprep.subr.mxu0 0.0
  %551 = vmatpush1.msra.mxu0 %v530
  %552 = vmatprep.subr.mxu0 0.0
  %553 = vmatpush1.msra.mxu0 %v531
  %554 = vmatprep.subr.mxu0 0.0
  %555 = vmatpush1.msra.mxu0 %v532
  %556 = vmatprep.subr.mxu0 0.0
  %557 = vmatpush1.msra.mxu0 %v533
  %558 = vmatprep.subr.mxu0 0.0
  %559 = vmatpush1.msra.mxu0 0.0
  %560 = vmatprep.subr.mxu0 0.0
  %561 = vmatpush1.msra.mxu0 0.0
  %562 = vmatprep.subr.mxu0 0.0
  %563 = vmatpush1.msra.mxu0 0.0
  %564 = vmatprep.subr.mxu0 0.0
  %565 = vmatpush1.msra.mxu0 0.0
  %566 = vmatprep.subr.mxu0 0.0
  %567 = vmatpush1.msra.mxu0 0.0
  %568 = vmatprep.subr.mxu0 0.0
  %569 = vmatpush1.msra.mxu0 0.0
  %570 = vmatprep.subr.mxu0 0.0
  %571 = vmatpush1.msra.mxu0 0.0
  %572 = vmatprep.subr.mxu0 0.0
  %573 = vmatpush1.msra.mxu0 0.0
  %574 = vmatprep.subr.mxu0 0.0
  %575 = vmatpush1.msra.mxu0 0.0
  %576 = vmatprep.subr.mxu0 0.0
  %577 = vmatpush1.msra.mxu0 0.0
  %578 = vmatprep.subr.mxu0 0.0
  %579 = vmatpush1.msra.mxu0 0.0
  %580 = vmatprep.subr.mxu0 0.0
  %581 = vmatpush1.msra.mxu0 0.0
  %582 = vmatprep.subr.mxu0 0.0
  %583 = vmatpush1.msra.mxu0 0.0
  %584 = vmatprep.subr.mxu0 0.0
  %585 = vmatpush1.msra.mxu0 0.0
  %586 = vmatprep.subr.mxu0 0.0
  %587 = vmatpush1.msra.mxu0 0.0
  %588 = vmatprep.subr.mxu0 0.0
  %589 = vmatpush1.msra.mxu0 0.0
  %590 = vmatprep.subr.mxu0 0.0
  %591 = vmatpush1.msra.mxu0 0.0
  %592 = vmatprep.subr.mxu0 0.0
  %593 = vmatpush1.msra.mxu0 0.0
  %594 = vmatprep.subr.mxu0 0.0
  %595 = vmatpush1.msra.mxu0 0.0
  %596 = vmatprep.subr.mxu0 0.0
  %597 = vmatpush1.msra.mxu0 0.0
  %598 = vmatprep.subr.mxu0 0.0
  %599 = vmatpush1.msra.mxu0 0.0
  %600 = vmatprep.subr.mxu0 0.0
  %601 = vmatpush1.msra.mxu0 0.0
  %602 = vmatprep.subr.mxu0 0.0
  %603 = vmatpush1.msra.mxu0 0.0
  %604 = vmatprep.subr.mxu0 0.0
  %605 = vmatpush1.msra.mxu0 0.0
  %606 = vmatprep.subr.mxu0 0.0
  %607 = vmatpush1.msra.mxu0 0.0
  %608 = vmatprep.subr.mxu0 0.0
  %609 = vmatpush1.msra.mxu0 0.0
  %610 = vmatprep.subr.mxu0 0.0
  %611 = vmatpush1.msra.mxu0 0.0
  %612 = vmatprep.subr.mxu0 0.0
  %613 = vmatpush1.msra.mxu0 0.0
  %614 = vmatprep.mubr.f32.mxu0 0.0
  %615 = vmatmul.mubr.f32.gmra.mrb[0].mxu0 %v539
  %v616 = vpop.f32.mrb[0].mxu0
  %v617 = vadd.f32 0.0, %v616
  %v618 = vpop.f32.mrb[0].mxu0
  %619 = vmatprep.mubr.f32.mxu0 0.0
  %620 = vmatmul.mubr.f32.gmra.mrb[0].mxu0 %v542
  %v621 = vpop.f32.mrb[0].mxu0
  %v622 = vadd.f32 0.0, %v621
  %v623 = vpop.f32.mrb[0].mxu0
  %624 = vmatprep.mubr.f32.mxu0 0.0
  %625 = vmatmul.mubr.f32.gmra.mrb[0].mxu0 %v545
  %v626 = vpop.f32.mrb[0].mxu0
  %v627 = vadd.f32 0.0, %v626
  %v628 = vpop.f32.mrb[0].mxu0
  %629 = vmatprep.mubr.f32.mxu0 0.0
  %630 = vmatmul.mubr.f32.gmra.mrb[0].mxu0 %v548
  %v631 = vpop.f32.mrb[0].mxu0
  %v632 = vadd.f32 0.0, %v631
  %v633 = vpop.f32.mrb[0].mxu0
  %634 = vdwg.mxu0
  %v636 = vsel %vm76, %v497, 0
  %v639 = vsel %vm76, %v498, 0
  %v642 = vsel %vm76, %v499, 0
  %v645 = vsel %vm76, %v500, 0
  %647 = vmatprep.subr.mxu0 0.0
  %648 = vmatpush1.msra.mxu0 %v488
  %649 = vmatprep.subr.mxu0 0.0
  %650 = vmatpush1.msra.mxu0 %v490
  %651 = vmatprep.subr.mxu0 0.0
  %652 = vmatpush1.msra.mxu0 %v492
  %653 = vmatprep.subr.mxu0 0.0
  %654 = vmatpush1.msra.mxu0 %v494
  %655 = vmatprep.subr.mxu0 0.0
  %656 = vmatpush1.msra.mxu0 0.0
  %657 = vmatprep.subr.mxu0 0.0
  %658 = vmatpush1.msra.mxu0 0.0
  %659 = vmatprep.subr.mxu0 0.0
  %660 = vmatpush1.msra.mxu0 0.0
  %661 = vmatprep.subr.mxu0 0.0
  %662 = vmatpush1.msra.mxu0 0.0
  %663 = vmatprep.subr.mxu0 0.0
  %664 = vmatpush1.msra.mxu0 0.0
  %665 = vmatprep.subr.mxu0 0.0
  %666 = vmatpush1.msra.mxu0 0.0
  %667 = vmatprep.subr.mxu0 0.0
  %668 = vmatpush1.msra.mxu0 0.0
  %669 = vmatprep.subr.mxu0 0.0
  %670 = vmatpush1.msra.mxu0 0.0
  %671 = vmatprep.subr.mxu0 0.0
  %672 = vmatpush1.msra.mxu0 0.0
  %673 = vmatprep.subr.mxu0 0.0
  %674 = vmatpush1.msra.mxu0 0.0
  %675 = vmatprep.subr.mxu0 0.0
  %676 = vmatpush1.msra.mxu0 0.0
  %677 = vmatprep.subr.mxu0 0.0
  %678 = vmatpush1.msra.mxu0 0.0
  %679 = vmatprep.subr.mxu0 0.0
  %680 = vmatpush1.msra.mxu0 0.0
  %681 = vmatprep.subr.mxu0 0.0
  %682 = vmatpush1.msra.mxu0 0.0
  %683 = vmatprep.subr.mxu0 0.0
  %684 = vmatpush1.msra.mxu0 0.0
  %685 = vmatprep.subr.mxu0 0.0
  %686 = vmatpush1.msra.mxu0 0.0
  %687 = vmatprep.subr.mxu0 0.0
  %688 = vmatpush1.msra.mxu0 0.0
  %689 = vmatprep.subr.mxu0 0.0
  %690 = vmatpush1.msra.mxu0 0.0
  %691 = vmatprep.subr.mxu0 0.0
  %692 = vmatpush1.msra.mxu0 0.0
  %693 = vmatprep.subr.mxu0 0.0
  %694 = vmatpush1.msra.mxu0 0.0
  %695 = vmatprep.subr.mxu0 0.0
  %696 = vmatpush1.msra.mxu0 0.0
  %697 = vmatprep.subr.mxu0 0.0
  %698 = vmatpush1.msra.mxu0 0.0
  %699 = vmatprep.subr.mxu0 0.0
  %700 = vmatpush1.msra.mxu0 0.0
  %701 = vmatprep.subr.mxu0 0.0
  %702 = vmatpush1.msra.mxu0 0.0
  %703 = vmatprep.subr.mxu0 0.0
  %704 = vmatpush1.msra.mxu0 0.0
  %705 = vmatprep.subr.mxu0 0.0
  %706 = vmatpush1.msra.mxu0 0.0
  %707 = vmatprep.subr.mxu0 0.0
  %708 = vmatpush1.msra.mxu0 0.0
  %709 = vmatprep.subr.mxu0 0.0
  %710 = vmatpush1.msra.mxu0 0.0
  %711 = vmatprep.mubr.f32.mxu0 0.0
  %712 = vmatmul.mubr.f32.gmra.mrb[0].mxu0 %v636
  %v713 = vpop.f32.mrb[0].mxu0
  %v714 = vadd.f32 %v617, %v713
  %v715 = vpop.f32.mrb[0].mxu0
  %716 = vmatprep.mubr.f32.mxu0 0.0
  %717 = vmatmul.mubr.f32.gmra.mrb[0].mxu0 %v639
  %v718 = vpop.f32.mrb[0].mxu0
  %v719 = vadd.f32 %v622, %v718
  %v720 = vpop.f32.mrb[0].mxu0
  %721 = vmatprep.mubr.f32.mxu0 0.0
  %722 = vmatmul.mubr.f32.gmra.mrb[0].mxu0 %v642
  %v723 = vpop.f32.mrb[0].mxu0
  %v724 = vadd.f32 %v627, %v723
  %v725 = vpop.f32.mrb[0].mxu0
  %726 = vmatprep.mubr.f32.mxu0 0.0
  %727 = vmatmul.mubr.f32.gmra.mrb[0].mxu0 %v645
  %v728 = vpop.f32.mrb[0].mxu0
  %v729 = vadd.f32 %v632, %v728
  %v730 = vpop.f32.mrb[0].mxu0
  %731 = vdwg.mxu0
  %s732 = scalar_lea.vmem %s1, 160
  %v733 = vld [vmem:[%s732] sm:$0xff]
  %v734 = vld [vmem:[%s732 + $0x8] sm:$0xff]
  %v735 = vld [vmem:[%s732 + $0x10] sm:$0xff]
  %v736 = vld [vmem:[%s732 + $0x18] sm:$0xff]
  %737 = vrot.lane.b32.xlu0 %v488, 126
  %v738 = vpop.permute.xlu0 %737
  %739 = vrot.lane.b32.xlu0 %v489, 126
  %v740 = vpop.permute.xlu0 %739
  %741 = vrot.lane.b32.xlu0 %v490, 126
  %v742 = vpop.permute.xlu0 %741
  %743 = vrot.lane.b32.xlu0 %v491, 126
  %v744 = vpop.permute.xlu0 %743
  %745 = vrot.lane.b32.xlu0 %v492, 126
  %v746 = vpop.permute.xlu0 %745
  %747 = vrot.lane.b32.xlu0 %v493, 126
  %v748 = vpop.permute.xlu0 %747
  %749 = vrot.lane.b32.xlu0 %v494, 126
  %v750 = vpop.permute.xlu0 %749
  %751 = vrot.lane.b32.xlu0 %v495, 126
  %v752 = vpop.permute.xlu0 %751
  %v753 = vsel %vm292, %v738, %v740
  %v754 = vsel %vm292, %v742, %v744
  %v755 = vsel %vm292, %v746, %v748
  %v756 = vsel %vm292, %v750, %v752
  %v762 = vsel %vm76, %v733, 0
  %v765 = vsel %vm76, %v734, 0
  %v768 = vsel %vm76, %v735, 0
  %v771 = vsel %vm76, %v736, 0
  %773 = vmatprep.subr.mxu0 0.0
  %774 = vmatpush1.msra.mxu0 %v753
  %775 = vmatprep.subr.mxu0 0.0
  %776 = vmatpush1.msra.mxu0 %v754
  %777 = vmatprep.subr.mxu0 0.0
  %778 = vmatpush1.msra.mxu0 %v755
  %779 = vmatprep.subr.mxu0 0.0
  %780 = vmatpush1.msra.mxu0 %v756
  %781 = vmatprep.subr.mxu0 0.0
  %782 = vmatpush1.msra.mxu0 0.0
  %783 = vmatprep.subr.mxu0 0.0
  %784 = vmatpush1.msra.mxu0 0.0
  %785 = vmatprep.subr.mxu0 0.0
  %786 = vmatpush1.msra.mxu0 0.0
  %787 = vmatprep.subr.mxu0 0.0
  %788 = vmatpush1.msra.mxu0 0.0
  %789 = vmatprep.subr.mxu0 0.0
  %790 = vmatpush1.msra.mxu0 0.0
  %791 = vmatprep.subr.mxu0 0.0
  %792 = vmatpush1.msra.mxu0 0.0
  %793 = vmatprep.subr.mxu0 0.0
  %794 = vmatpush1.msra.mxu0 0.0
  %795 = vmatprep.subr.mxu0 0.0
  %796 = vmatpush1.msra.mxu0 0.0
  %797 = vmatprep.subr.mxu0 0.0
  %798 = vmatpush1.msra.mxu0 0.0
  %799 = vmatprep.subr.mxu0 0.0
  %800 = vmatpush1.msra.mxu0 0.0
  %801 = vmatprep.subr.mxu0 0.0
  %802 = vmatpush1.msra.mxu0 0.0
  %803 = vmatprep.subr.mxu0 0.0
  %804 = vmatpush1.msra.mxu0 0.0
  %805 = vmatprep.subr.mxu0 0.0
  %806 = vmatpush1.msra.mxu0 0.0
  %807 = vmatprep.subr.mxu0 0.0
  %808 = vmatpush1.msra.mxu0 0.0
  %809 = vmatprep.subr.mxu0 0.0
  %810 = vmatpush1.msra.mxu0 0.0
  %811 = vmatprep.subr.mxu0 0.0
  %812 = vmatpush1.msra.mxu0 0.0
  %813 = vmatprep.subr.mxu0 0.0
  %814 = vmatpush1.msra.mxu0 0.0
  %815 = vmatprep.subr.mxu0 0.0
  %816 = vmatpush1.msra.mxu0 0.0
  %817 = vmatprep.subr.mxu0 0.0
  %818 = vmatpush1.msra.mxu0 0.0
  %819 = vmatprep.subr.mxu0 0.0
  %820 = vmatpush1.msra.mxu0 0.0
  %821 = vmatprep.subr.mxu0 0.0
  %822 = vmatpush1.msra.mxu0 0.0
  %823 = vmatprep.subr.mxu0 0.0
  %824 = vmatpush1.msra.mxu0 0.0
  %825 = vmatprep.subr.mxu0 0.0
  %826 = vmatpush1.msra.mxu0 0.0
  %827 = vmatprep.subr.mxu0 0.0
  %828 = vmatpush1.msra.mxu0 0.0
  %829 = vmatprep.subr.mxu0 0.0
  %830 = vmatpush1.msra.mxu0 0.0
  %831 = vmatprep.subr.mxu0 0.0
  %832 = vmatpush1.msra.mxu0 0.0
  %833 = vmatprep.subr.mxu0 0.0
  %834 = vmatpush1.msra.mxu0 0.0
  %835 = vmatprep.subr.mxu0 0.0
  %836 = vmatpush1.msra.mxu0 0.0
  %837 = vmatprep.mubr.f32.mxu0 0.0
  %838 = vmatmul.mubr.f32.gmra.mrb[0].mxu0 %v762
  %v839 = vpop.f32.mrb[0].mxu0
  %v840 = vadd.f32 0.0, %v839
  %v841 = vpop.f32.mrb[0].mxu0
  %842 = vmatprep.mubr.f32.mxu0 0.0
  %843 = vmatmul.mubr.f32.gmra.mrb[0].mxu0 %v765
  %v844 = vpop.f32.mrb[0].mxu0
  %v845 = vadd.f32 0.0, %v844
  %v846 = vpop.f32.mrb[0].mxu0
  %847 = vmatprep.mubr.f32.mxu0 0.0
  %848 = vmatmul.mubr.f32.gmra.mrb[0].mxu0 %v768
  %v849 = vpop.f32.mrb[0].mxu0
  %v850 = vadd.f32 0.0, %v849
  %v851 = vpop.f32.mrb[0].mxu0
  %852 = vmatprep.mubr.f32.mxu0 0.0
  %853 = vmatmul.mubr.f32.gmra.mrb[0].mxu0 %v771
  %v854 = vpop.f32.mrb[0].mxu0
  %v855 = vadd.f32 0.0, %v854
  %v856 = vpop.f32.mrb[0].mxu0
  %857 = vdwg.mxu0
  %v858 = vadd.f32 %v714, %v840
  %v859 = vadd.f32 %v719, %v845
  %v860 = vadd.f32 %v724, %v850
  %v861 = vadd.f32 %v729, %v855
  %s862 = scalar_lea.vmem %s2, 32
  %v863 = vld [vmem:[%s862] sm:$0xff]
  %v864 = vld [vmem:[%s862 + $0x8] sm:$0xff]
  %v865 = vld [vmem:[%s862 + $0x10] sm:$0xff]
  %v866 = vld [vmem:[%s862 + $0x18] sm:$0xff]
  %868 = vset.pattern.permute.xlu0 0
  %869 = vperm.xlu0 %868, %v863
  %v870 = vpop.permute.xlu0 %869
  %873 = vset.pattern.permute.xlu0 0
  %874 = vperm.xlu0 %873, %v864
  %v875 = vpop.permute.xlu0 %874
  %878 = vset.pattern.permute.xlu0 0
  %879 = vperm.xlu0 %878, %v865
  %v880 = vpop.permute.xlu0 %879
  %883 = vset.pattern.permute.xlu0 0
  %884 = vperm.xlu0 %883, %v866
  %v885 = vpop.permute.xlu0 %884
  %v887 = vmul.f32 %v858, %v870
  %v888 = vmul.f32 %v859, %v875
  %v889 = vmul.f32 %v860, %v880
  %v890 = vmul.f32 %v861, %v885
  %s891 = scalar_lea.vmem %s3, 32
  %v892 = vld [vmem:[%s891] sm:$0xff]
  %v893 = vld [vmem:[%s891 + $0x8] sm:$0xff]
  %v894 = vld [vmem:[%s891 + $0x10] sm:$0xff]
  %v895 = vld [vmem:[%s891 + $0x18] sm:$0xff]
  %897 = vset.pattern.permute.xlu0 0
  %898 = vperm.xlu0 %897, %v892
  %v899 = vpop.permute.xlu0 %898
  %902 = vset.pattern.permute.xlu0 0
  %903 = vperm.xlu0 %902, %v893
  %v904 = vpop.permute.xlu0 %903
  %907 = vset.pattern.permute.xlu0 0
  %908 = vperm.xlu0 %907, %v894
  %v909 = vpop.permute.xlu0 %908
  %912 = vset.pattern.permute.xlu0 0
  %913 = vperm.xlu0 %912, %v895
  %v914 = vpop.permute.xlu0 %913
  %v916 = vadd.f32 %v887, %v899
  %v917 = vadd.f32 %v888, %v904
  %v918 = vadd.f32 %v889, %v909
  %v919 = vadd.f32 %v890, %v914
  %v920 = vmax.f32 %v916, 0.0
  %v921 = vmax.f32 %v917, 0.0
  %v922 = vmax.f32 %v918, 0.0
  %v923 = vmax.f32 %v919, 0.0
  %924 = vst [vmem:[%s4] sm:$0xff] %v920
  %925 = vst [vmem:[%s4 + $0x8] sm:$0xff] %v921
  %926 = vst [vmem:[%s4 + $0x10] sm:$0xff] %v922
  %927 = vst [vmem:[%s4 + $0x18] sm:$0xff] %v923
  %s928 = scalar_lea.vmem %s0, 64
  %v929 = vld [vmem:[%s928] sm:$0xff]
  %v930 = vld [vmem:[%s928 + $0x8] sm:$0xff]
  %v931 = vld [vmem:[%s928 + $0x10] sm:$0xff]
  %v932 = vld [vmem:[%s928 + $0x18] sm:$0xff]
  %v933 = vld [vmem:[%s928 + $0x20] sm:$0xff]
  %v934 = vld [vmem:[%s928 + $0x28] sm:$0xff]
  %v935 = vld [vmem:[%s928 + $0x30] sm:$0xff]
  %v936 = vld [vmem:[%s928 + $0x38] sm:$0xff]
  %v937 = vld [vmem:[%s1] sm:$0xff]
  %v938 = vld [vmem:[%s1 + $0x8] sm:$0xff]
  %v939 = vld [vmem:[%s1 + $0x10] sm:$0xff]
  %v940 = vld [vmem:[%s1 + $0x18] sm:$0xff]
  %v941 = vld [vmem:[%s38] sm:$0xff]
  %v942 = vld [vmem:[%s38 + $0x8] sm:$0xff]
  %v943 = vld [vmem:[%s38 + $0x10] sm:$0xff]
  %v944 = vld [vmem:[%s38 + $0x18] sm:$0xff]
  %953 = vrot.lane.b32.xlu0 %v929, 127
  %v954 = vpop.permute.xlu0 %953
  %955 = vrot.lane.b32.xlu0 %v930, 127
  %v956 = vpop.permute.xlu0 %955
  %957 = vrot.lane.b32.xlu0 %v931, 127
  %v958 = vpop.permute.xlu0 %957
  %959 = vrot.lane.b32.xlu0 %v932, 127
  %v960 = vpop.permute.xlu0 %959
  %961 = vrot.lane.b32.xlu0 %v933, 127
  %v962 = vpop.permute.xlu0 %961
  %963 = vrot.lane.b32.xlu0 %v934, 127
  %v964 = vpop.permute.xlu0 %963
  %965 = vrot.lane.b32.xlu0 %v935, 127
  %v966 = vpop.permute.xlu0 %965
  %967 = vrot.lane.b32.xlu0 %v936, 127
  %v968 = vpop.permute.xlu0 %967
  %v969 = vsel %vm67, %v954, %v956
  %v970 = vsel %vm67, %v958, %v960
  %v971 = vsel %vm67, %v962, %v964
  %v972 = vsel %vm67, %v966, %v968
  %v978 = vsel %vm76, %v941, 0
  %v981 = vsel %vm76, %v942, 0
  %v984 = vsel %vm76, %v943, 0
  %v987 = vsel %vm76, %v944, 0
  %989 = vmatprep.subr.mxu0 0.0
  %990 = vmatpush1.msra.mxu0 %v969
  %991 = vmatprep.subr.mxu0 0.0
  %992 = vmatpush1.msra.mxu0 %v970
  %993 = vmatprep.subr.mxu0 0.0
  %994 = vmatpush1.msra.mxu0 %v971
  %995 = vmatprep.subr.mxu0 0.0
  %996 = vmatpush1.msra.mxu0 %v972
  %997 = vmatprep.subr.mxu0 0.0
  %998 = vmatpush1.msra.mxu0 0.0
  %999 = vmatprep.subr.mxu0 0.0
  %1000 = vmatpush1.msra.mxu0 0.0
  %1001 = vmatprep.subr.mxu0 0.0
  %1002 = vmatpush1.msra.mxu0 0.0
  %1003 = vmatprep.subr.mxu0 0.0
  %1004 = vmatpush1.msra.mxu0 0.0
  %1005 = vmatprep.subr.mxu0 0.0
  %1006 = vmatpush1.msra.mxu0 0.0
  %1007 = vmatprep.subr.mxu0 0.0
  %1008 = vmatpush1.msra.mxu0 0.0
  %1009 = vmatprep.subr.mxu0 0.0
  %1010 = vmatpush1.msra.mxu0 0.0
  %1011 = vmatprep.subr.mxu0 0.0
  %1012 = vmatpush1.msra.mxu0 0.0
  %1013 = vmatprep.subr.mxu0 0.0
  %1014 = vmatpush1.msra.mxu0 0.0
  %1015 = vmatprep.subr.mxu0 0.0
  %1016 = vmatpush1.msra.mxu0 0.0
  %1017 = vmatprep.subr.mxu0 0.0
  %1018 = vmatpush1.msra.mxu0 0.0
  %1019 = vmatprep.subr.mxu0 0.0
  %1020 = vmatpush1.msra.mxu0 0.0
  %1021 = vmatprep.subr.mxu0 0.0
  %1022 = vmatpush1.msra.mxu0 0.0
  %1023 = vmatprep.subr.mxu0 0.0
  %1024 = vmatpush1.msra.mxu0 0.0
  %1025 = vmatprep.subr.mxu0 0.0
  %1026 = vmatpush1.msra.mxu0 0.0
  %1027 = vmatprep.subr.mxu0 0.0
  %1028 = vmatpush1.msra.mxu0 0.0
  %1029 = vmatprep.subr.mxu0 0.0
  %1030 = vmatpush1.msra.mxu0 0.0
  %1031 = vmatprep.subr.mxu0 0.0
  %1032 = vmatpush1.msra.mxu0 0.0
  %1033 = vmatprep.subr.mxu0 0.0
  %1034 = vmatpush1.msra.mxu0 0.0
  %1035 = vmatprep.subr.mxu0 0.0
  %1036 = vmatpush1.msra.mxu0 0.0
  %1037 = vmatprep.subr.mxu0 0.0
  %1038 = vmatpush1.msra.mxu0 0.0
  %1039 = vmatprep.subr.mxu0 0.0
  %1040 = vmatpush1.msra.mxu0 0.0
  %1041 = vmatprep.subr.mxu0 0.0
  %1042 = vmatpush1.msra.mxu0 0.0
  %1043 = vmatprep.subr.mxu0 0.0
  %1044 = vmatpush1.msra.mxu0 0.0
  %1045 = vmatprep.subr.mxu0 0.0
  %1046 = vmatpush1.msra.mxu0 0.0
  %1047 = vmatprep.subr.mxu0 0.0
  %1048 = vmatpush1.msra.mxu0 0.0
  %1049 = vmatprep.subr.mxu0 0.0
  %1050 = vmatpush1.msra.mxu0 0.0
  %1051 = vmatprep.subr.mxu0 0.0
  %1052 = vmatpush1.msra.mxu0 0.0
  %1053 = vmatprep.mubr.f32.mxu0 0.0
  %1054 = vmatmul.mubr.f32.gmra.mrb[0].mxu0 %v978
  %v1055 = vpop.f32.mrb[0].mxu0
  %v1056 = vadd.f32 0.0, %v1055
  %v1057 = vpop.f32.mrb[0].mxu0
  %1058 = vmatprep.mubr.f32.mxu0 0.0
  %1059 = vmatmul.mubr.f32.gmra.mrb[0].mxu0 %v981
  %v1060 = vpop.f32.mrb[0].mxu0
  %v1061 = vadd.f32 0.0, %v1060
  %v1062 = vpop.f32.mrb[0].mxu0
  %1063 = vmatprep.mubr.f32.mxu0 0.0
  %1064 = vmatmul.mubr.f32.gmra.mrb[0].mxu0 %v984
  %v1065 = vpop.f32.mrb[0].mxu0
  %v1066 = vadd.f32 0.0, %v1065
  %v1067 = vpop.f32.mrb[0].mxu0
  %1068 = vmatprep.mubr.f32.mxu0 0.0
  %1069 = vmatmul.mubr.f32.gmra.mrb[0].mxu0 %v987
  %v1070 = vpop.f32.mrb[0].mxu0
  %v1071 = vadd.f32 0.0, %v1070
  %v1072 = vpop.f32.mrb[0].mxu0
  %1073 = vdwg.mxu0
  %v1075 = vsel %vm76, %v937, 0
  %v1078 = vsel %vm76, %v938, 0
  %v1081 = vsel %vm76, %v939, 0
  %v1084 = vsel %vm76, %v940, 0
  %1086 = vmatprep.subr.mxu0 0.0
  %1087 = vmatpush1.msra.mxu0 %v929
  %1088 = vmatprep.subr.mxu0 0.0
  %1089 = vmatpush1.msra.mxu0 %v931
  %1090 = vmatprep.subr.mxu0 0.0
  %1091 = vmatpush1.msra.mxu0 %v933
  %1092 = vmatprep.subr.mxu0 0.0
  %1093 = vmatpush1.msra.mxu0 %v935
  %1094 = vmatprep.subr.mxu0 0.0
  %1095 = vmatpush1.msra.mxu0 0.0
  %1096 = vmatprep.subr.mxu0 0.0
  %1097 = vmatpush1.msra.mxu0 0.0
  %1098 = vmatprep.subr.mxu0 0.0
  %1099 = vmatpush1.msra.mxu0 0.0
  %1100 = vmatprep.subr.mxu0 0.0
  %1101 = vmatpush1.msra.mxu0 0.0
  %1102 = vmatprep.subr.mxu0 0.0
  %1103 = vmatpush1.msra.mxu0 0.0
  %1104 = vmatprep.subr.mxu0 0.0
  %1105 = vmatpush1.msra.mxu0 0.0
  %1106 = vmatprep.subr.mxu0 0.0
  %1107 = vmatpush1.msra.mxu0 0.0
  %1108 = vmatprep.subr.mxu0 0.0
  %1109 = vmatpush1.msra.mxu0 0.0
  %1110 = vmatprep.subr.mxu0 0.0
  %1111 = vmatpush1.msra.mxu0 0.0
  %1112 = vmatprep.subr.mxu0 0.0
  %1113 = vmatpush1.msra.mxu0 0.0
  %1114 = vmatprep.subr.mxu0 0.0
  %1115 = vmatpush1.msra.mxu0 0.0
  %1116 = vmatprep.subr.mxu0 0.0
  %1117 = vmatpush1.msra.mxu0 0.0
  %1118 = vmatprep.subr.mxu0 0.0
  %1119 = vmatpush1.msra.mxu0 0.0
  %1120 = vmatprep.subr.mxu0 0.0
  %1121 = vmatpush1.msra.mxu0 0.0
  %1122 = vmatprep.subr.mxu0 0.0
  %1123 = vmatpush1.msra.mxu0 0.0
  %1124 = vmatprep.subr.mxu0 0.0
  %1125 = vmatpush1.msra.mxu0 0.0
  %1126 = vmatprep.subr.mxu0 0.0
  %1127 = vmatpush1.msra.mxu0 0.0
  %1128 = vmatprep.subr.mxu0 0.0
  %1129 = vmatpush1.msra.mxu0 0.0
  %1130 = vmatprep.subr.mxu0 0.0
  %1131 = vmatpush1.msra.mxu0 0.0
  %1132 = vmatprep.subr.mxu0 0.0
  %1133 = vmatpush1.msra.mxu0 0.0
  %1134 = vmatprep.subr.mxu0 0.0
  %1135 = vmatpush1.msra.mxu0 0.0
  %1136 = vmatprep.subr.mxu0 0.0
  %1137 = vmatpush1.msra.mxu0 0.0
  %1138 = vmatprep.subr.mxu0 0.0
  %1139 = vmatpush1.msra.mxu0 0.0
  %1140 = vmatprep.subr.mxu0 0.0
  %1141 = vmatpush1.msra.mxu0 0.0
  %1142 = vmatprep.subr.mxu0 0.0
  %1143 = vmatpush1.msra.mxu0 0.0
  %1144 = vmatprep.subr.mxu0 0.0
  %1145 = vmatpush1.msra.mxu0 0.0
  %1146 = vmatprep.subr.mxu0 0.0
  %1147 = vmatpush1.msra.mxu0 0.0
  %1148 = vmatprep.subr.mxu0 0.0
  %1149 = vmatpush1.msra.mxu0 0.0
  %1150 = vmatprep.mubr.f32.mxu0 0.0
  %1151 = vmatmul.mubr.f32.gmra.mrb[0].mxu0 %v1075
  %v1152 = vpop.f32.mrb[0].mxu0
  %v1153 = vadd.f32 %v1056, %v1152
  %v1154 = vpop.f32.mrb[0].mxu0
  %1155 = vmatprep.mubr.f32.mxu0 0.0
  %1156 = vmatmul.mubr.f32.gmra.mrb[0].mxu0 %v1078
  %v1157 = vpop.f32.mrb[0].mxu0
  %v1158 = vadd.f32 %v1061, %v1157
  %v1159 = vpop.f32.mrb[0].mxu0
  %1160 = vmatprep.mubr.f32.mxu0 0.0
  %1161 = vmatmul.mubr.f32.gmra.mrb[0].mxu0 %v1081
  %v1162 = vpop.f32.mrb[0].mxu0
  %v1163 = vadd.f32 %v1066, %v1162
  %v1164 = vpop.f32.mrb[0].mxu0
  %1165 = vmatprep.mubr.f32.mxu0 0.0
  %1166 = vmatmul.mubr.f32.gmra.mrb[0].mxu0 %v1084
  %v1167 = vpop.f32.mrb[0].mxu0
  %v1168 = vadd.f32 %v1071, %v1167
  %v1169 = vpop.f32.mrb[0].mxu0
  %1170 = vdwg.mxu0
  %v1171 = vld [vmem:[%s271] sm:$0xff]
  %v1172 = vld [vmem:[%s271 + $0x8] sm:$0xff]
  %v1173 = vld [vmem:[%s271 + $0x10] sm:$0xff]
  %v1174 = vld [vmem:[%s271 + $0x18] sm:$0xff]
  %1175 = vrot.lane.b32.xlu0 %v929, 126
  %v1176 = vpop.permute.xlu0 %1175
  %1177 = vrot.lane.b32.xlu0 %v930, 126
  %v1178 = vpop.permute.xlu0 %1177
  %1179 = vrot.lane.b32.xlu0 %v931, 126
  %v1180 = vpop.permute.xlu0 %1179
  %1181 = vrot.lane.b32.xlu0 %v932, 126
  %v1182 = vpop.permute.xlu0 %1181
  %1183 = vrot.lane.b32.xlu0 %v933, 126
  %v1184 = vpop.permute.xlu0 %1183
  %1185 = vrot.lane.b32.xlu0 %v934, 126
  %v1186 = vpop.permute.xlu0 %1185
  %1187 = vrot.lane.b32.xlu0 %v935, 126
  %v1188 = vpop.permute.xlu0 %1187
  %1189 = vrot.lane.b32.xlu0 %v936, 126
  %v1190 = vpop.permute.xlu0 %1189
  %v1191 = vsel %vm292, %v1176, %v1178
  %v1192 = vsel %vm292, %v1180, %v1182
  %v1193 = vsel %vm292, %v1184, %v1186
  %v1194 = vsel %vm292, %v1188, %v1190
  %v1200 = vsel %vm76, %v1171, 0
  %v1203 = vsel %vm76, %v1172, 0
  %v1206 = vsel %vm76, %v1173, 0
  %v1209 = vsel %vm76, %v1174, 0
  %1211 = vmatprep.subr.mxu0 0.0
  %1212 = vmatpush1.msra.mxu0 %v1191
  %1213 = vmatprep.subr.mxu0 0.0
  %1214 = vmatpush1.msra.mxu0 %v1192
  %1215 = vmatprep.subr.mxu0 0.0
  %1216 = vmatpush1.msra.mxu0 %v1193
  %1217 = vmatprep.subr.mxu0 0.0
  %1218 = vmatpush1.msra.mxu0 %v1194
  %1219 = vmatprep.subr.mxu0 0.0
  %1220 = vmatpush1.msra.mxu0 0.0
  %1221 = vmatprep.subr.mxu0 0.0
  %1222 = vmatpush1.msra.mxu0 0.0
  %1223 = vmatprep.subr.mxu0 0.0
  %1224 = vmatpush1.msra.mxu0 0.0
  %1225 = vmatprep.subr.mxu0 0.0
  %1226 = vmatpush1.msra.mxu0 0.0
  %1227 = vmatprep.subr.mxu0 0.0
  %1228 = vmatpush1.msra.mxu0 0.0
  %1229 = vmatprep.subr.mxu0 0.0
  %1230 = vmatpush1.msra.mxu0 0.0
  %1231 = vmatprep.subr.mxu0 0.0
  %1232 = vmatpush1.msra.mxu0 0.0
  %1233 = vmatprep.subr.mxu0 0.0
  %1234 = vmatpush1.msra.mxu0 0.0
  %1235 = vmatprep.subr.mxu0 0.0
  %1236 = vmatpush1.msra.mxu0 0.0
  %1237 = vmatprep.subr.mxu0 0.0
  %1238 = vmatpush1.msra.mxu0 0.0
  %1239 = vmatprep.subr.mxu0 0.0
  %1240 = vmatpush1.msra.mxu0 0.0
  %1241 = vmatprep.subr.mxu0 0.0
  %1242 = vmatpush1.msra.mxu0 0.0
  %1243 = vmatprep.subr.mxu0 0.0
  %1244 = vmatpush1.msra.mxu0 0.0
  %1245 = vmatprep.subr.mxu0 0.0
  %1246 = vmatpush1.msra.mxu0 0.0
  %1247 = vmatprep.subr.mxu0 0.0
  %1248 = vmatpush1.msra.mxu0 0.0
  %1249 = vmatprep.subr.mxu0 0.0
  %1250 = vmatpush1.msra.mxu0 0.0
  %1251 = vmatprep.subr.mxu0 0.0
  %1252 = vmatpush1.msra.mxu0 0.0
  %1253 = vmatprep.subr.mxu0 0.0
  %1254 = vmatpush1.msra.mxu0 0.0
  %1255 = vmatprep.subr.mxu0 0.0
  %1256 = vmatpush1.msra.mxu0 0.0
  %1257 = vmatprep.subr.mxu0 0.0
  %1258 = vmatpush1.msra.mxu0 0.0
  %1259 = vmatprep.subr.mxu0 0.0
  %1260 = vmatpush1.msra.mxu0 0.0
  %1261 = vmatprep.subr.mxu0 0.0
  %1262 = vmatpush1.msra.mxu0 0.0
  %1263 = vmatprep.subr.mxu0 0.0
  %1264 = vmatpush1.msra.mxu0 0.0
  %1265 = vmatprep.subr.mxu0 0.0
  %1266 = vmatpush1.msra.mxu0 0.0
  %1267 = vmatprep.subr.mxu0 0.0
  %1268 = vmatpush1.msra.mxu0 0.0
  %1269 = vmatprep.subr.mxu0 0.0
  %1270 = vmatpush1.msra.mxu0 0.0
  %1271 = vmatprep.subr.mxu0 0.0
  %1272 = vmatpush1.msra.mxu0 0.0
  %1273 = vmatprep.subr.mxu0 0.0
  %1274 = vmatpush1.msra.mxu0 0.0
  %1275 = vmatprep.mubr.f32.mxu0 0.0
  %1276 = vmatmul.mubr.f32.gmra.mrb[0].mxu0 %v1200
  %v1277 = vpop.f32.mrb[0].mxu0
  %v1278 = vadd.f32 0.0, %v1277
  %v1279 = vpop.f32.mrb[0].mxu0
  %1280 = vmatprep.mubr.f32.mxu0 0.0
  %1281 = vmatmul.mubr.f32.gmra.mrb[0].mxu0 %v1203
  %v1282 = vpop.f32.mrb[0].mxu0
  %v1283 = vadd.f32 0.0, %v1282
  %v1284 = vpop.f32.mrb[0].mxu0
  %1285 = vmatprep.mubr.f32.mxu0 0.0
  %1286 = vmatmul.mubr.f32.gmra.mrb[0].mxu0 %v1206
  %v1287 = vpop.f32.mrb[0].mxu0
  %v1288 = vadd.f32 0.0, %v1287
  %v1289 = vpop.f32.mrb[0].mxu0
  %1290 = vmatprep.mubr.f32.mxu0 0.0
  %1291 = vmatmul.mubr.f32.gmra.mrb[0].mxu0 %v1209
  %v1292 = vpop.f32.mrb[0].mxu0
  %v1293 = vadd.f32 0.0, %v1292
  %v1294 = vpop.f32.mrb[0].mxu0
  %1295 = vdwg.mxu0
  %v1296 = vadd.f32 %v1153, %v1278
  %v1297 = vadd.f32 %v1158, %v1283
  %v1298 = vadd.f32 %v1163, %v1288
  %v1299 = vadd.f32 %v1168, %v1293
  %v1300 = vld [vmem:[%s2] sm:$0xff]
  %v1301 = vld [vmem:[%s2 + $0x8] sm:$0xff]
  %v1302 = vld [vmem:[%s2 + $0x10] sm:$0xff]
  %v1303 = vld [vmem:[%s2 + $0x18] sm:$0xff]
  %1305 = vset.pattern.permute.xlu0 0
  %1306 = vperm.xlu0 %1305, %v1300
  %v1307 = vpop.permute.xlu0 %1306
  %1310 = vset.pattern.permute.xlu0 0
  %1311 = vperm.xlu0 %1310, %v1301
  %v1312 = vpop.permute.xlu0 %1311
  %1315 = vset.pattern.permute.xlu0 0
  %1316 = vperm.xlu0 %1315, %v1302
  %v1317 = vpop.permute.xlu0 %1316
  %1320 = vset.pattern.permute.xlu0 0
  %1321 = vperm.xlu0 %1320, %v1303
  %v1322 = vpop.permute.xlu0 %1321
  %v1324 = vmul.f32 %v1296, %v1307
  %v1325 = vmul.f32 %v1297, %v1312
  %v1326 = vmul.f32 %v1298, %v1317
  %v1327 = vmul.f32 %v1299, %v1322
  %v1328 = vld [vmem:[%s3] sm:$0xff]
  %v1329 = vld [vmem:[%s3 + $0x8] sm:$0xff]
  %v1330 = vld [vmem:[%s3 + $0x10] sm:$0xff]
  %v1331 = vld [vmem:[%s3 + $0x18] sm:$0xff]
  %1333 = vset.pattern.permute.xlu0 0
  %1334 = vperm.xlu0 %1333, %v1328
  %v1335 = vpop.permute.xlu0 %1334
  %1338 = vset.pattern.permute.xlu0 0
  %1339 = vperm.xlu0 %1338, %v1329
  %v1340 = vpop.permute.xlu0 %1339
  %1343 = vset.pattern.permute.xlu0 0
  %1344 = vperm.xlu0 %1343, %v1330
  %v1345 = vpop.permute.xlu0 %1344
  %1348 = vset.pattern.permute.xlu0 0
  %1349 = vperm.xlu0 %1348, %v1331
  %v1350 = vpop.permute.xlu0 %1349
  %v1352 = vadd.f32 %v1324, %v1335
  %v1353 = vadd.f32 %v1325, %v1340
  %v1354 = vadd.f32 %v1326, %v1345
  %v1355 = vadd.f32 %v1327, %v1350
  %v1356 = vmax.f32 %v1352, 0.0
  %v1357 = vmax.f32 %v1353, 0.0
  %v1358 = vmax.f32 %v1354, 0.0
  %v1359 = vmax.f32 %v1355, 0.0
  %1364 = vrot.lane.b32.xlu0 %v1356, 1
  %v1365 = vpop.permute.xlu0 %1364
  %1366 = vrot.lane.b32.xlu0 %v1357, 1
  %v1367 = vpop.permute.xlu0 %1366
  %1368 = vrot.lane.b32.xlu0 %v1358, 1
  %v1369 = vpop.permute.xlu0 %1368
  %1370 = vrot.lane.b32.xlu0 %v1359, 1
  %v1371 = vpop.permute.xlu0 %1370
  %1376 = vst.msk [vmem:[#allocation2] sm:$0xff] %vm478, %v1365
  %1377 = vst.msk [vmem:[#allocation2 + $0x8] sm:$0xff] %vm480, %v1365
  %1378 = vst.msk [vmem:[#allocation2 + $0x10] sm:$0xff] %vm478, %v1367
  %1379 = vst.msk [vmem:[#allocation2 + $0x18] sm:$0xff] %vm480, %v1367
  %1380 = vst.msk [vmem:[#allocation2 + $0x20] sm:$0xff] %vm478, %v1369
  %1381 = vst.msk [vmem:[#allocation2 + $0x28] sm:$0xff] %vm480, %v1369
  %1382 = vst.msk [vmem:[#allocation2 + $0x30] sm:$0xff] %vm478, %v1371
  %1383 = vst.msk [vmem:[#allocation2 + $0x38] sm:$0xff] %vm480, %v1371
  %v1384 = vld [vmem:[#allocation2] sm:$0xff]
  %v1385 = vld [vmem:[#allocation2 + $0x8] sm:$0xff]
  %v1386 = vld [vmem:[#allocation2 + $0x10] sm:$0xff]
  %v1387 = vld [vmem:[#allocation2 + $0x18] sm:$0xff]
  %v1388 = vld [vmem:[#allocation2 + $0x20] sm:$0xff]
  %v1389 = vld [vmem:[#allocation2 + $0x28] sm:$0xff]
  %v1390 = vld [vmem:[#allocation2 + $0x30] sm:$0xff]
  %v1391 = vld [vmem:[#allocation2 + $0x38] sm:$0xff]
  %v1392 = vld [vmem:[%s496] sm:$0xff]
  %v1393 = vld [vmem:[%s496 + $0x8] sm:$0xff]
  %v1394 = vld [vmem:[%s496 + $0x10] sm:$0xff]
  %v1395 = vld [vmem:[%s496 + $0x18] sm:$0xff]
  %v1396 = vld [vmem:[%s501] sm:$0xff]
  %v1397 = vld [vmem:[%s501 + $0x8] sm:$0xff]
  %v1398 = vld [vmem:[%s501 + $0x10] sm:$0xff]
  %v1399 = vld [vmem:[%s501 + $0x18] sm:$0xff]
  %1408 = vrot.lane.b32.xlu0 %v1384, 127
  %v1409 = vpop.permute.xlu0 %1408
  %1410 = vrot.lane.b32.xlu0 %v1385, 127
  %v1411 = vpop.permute.xlu0 %1410
  %1412 = vrot.lane.b32.xlu0 %v1386, 127
  %v1413 = vpop.permute.xlu0 %1412
  %1414 = vrot.lane.b32.xlu0 %v1387, 127
  %v1415 = vpop.permute.xlu0 %1414
  %1416 = vrot.lane.b32.xlu0 %v1388, 127
  %v1417 = vpop.permute.xlu0 %1416
  %1418 = vrot.lane.b32.xlu0 %v1389, 127
  %v1419 = vpop.permute.xlu0 %1418
  %1420 = vrot.lane.b32.xlu0 %v1390, 127
  %v1421 = vpop.permute.xlu0 %1420
  %1422 = vrot.lane.b32.xlu0 %v1391, 127
  %v1423 = vpop.permute.xlu0 %1422
  %v1424 = vsel %vm67, %v1409, %v1411
  %v1425 = vsel %vm67, %v1413, %v1415
  %v1426 = vsel %vm67, %v1417, %v1419
  %v1427 = vsel %vm67, %v1421, %v1423
  %v1433 = vsel %vm76, %v1396, 0
  %v1436 = vsel %vm76, %v1397, 0
  %v1439 = vsel %vm76, %v1398, 0
  %v1442 = vsel %vm76, %v1399, 0
  %1444 = vmatprep.subr.mxu0 0.0
  %1445 = vmatpush1.msra.mxu0 %v1424
  %1446 = vmatprep.subr.mxu0 0.0
  %1447 = vmatpush1.msra.mxu0 %v1425
  %1448 = vmatprep.subr.mxu0 0.0
  %1449 = vmatpush1.msra.mxu0 %v1426
  %1450 = vmatprep.subr.mxu0 0.0
  %1451 = vmatpush1.msra.mxu0 %v1427
  %1452 = vmatprep.subr.mxu0 0.0
  %1453 = vmatpush1.msra.mxu0 0.0
  %1454 = vmatprep.subr.mxu0 0.0
  %1455 = vmatpush1.msra.mxu0 0.0
  %1456 = vmatprep.subr.mxu0 0.0
  %1457 = vmatpush1.msra.mxu0 0.0
  %1458 = vmatprep.subr.mxu0 0.0
  %1459 = vmatpush1.msra.mxu0 0.0
  %1460 = vmatprep.subr.mxu0 0.0
  %1461 = vmatpush1.msra.mxu0 0.0
  %1462 = vmatprep.subr.mxu0 0.0
  %1463 = vmatpush1.msra.mxu0 0.0
  %1464 = vmatprep.subr.mxu0 0.0
  %1465 = vmatpush1.msra.mxu0 0.0
  %1466 = vmatprep.subr.mxu0 0.0
  %1467 = vmatpush1.msra.mxu0 0.0
  %1468 = vmatprep.subr.mxu0 0.0
  %1469 = vmatpush1.msra.mxu0 0.0
  %1470 = vmatprep.subr.mxu0 0.0
  %1471 = vmatpush1.msra.mxu0 0.0
  %1472 = vmatprep.subr.mxu0 0.0
  %1473 = vmatpush1.msra.mxu0 0.0
  %1474 = vmatprep.subr.mxu0 0.0
  %1475 = vmatpush1.msra.mxu0 0.0
  %1476 = vmatprep.subr.mxu0 0.0
  %1477 = vmatpush1.msra.mxu0 0.0
  %1478 = vmatprep.subr.mxu0 0.0
  %1479 = vmatpush1.msra.mxu0 0.0
  %1480 = vmatprep.subr.mxu0 0.0
  %1481 = vmatpush1.msra.mxu0 0.0
  %1482 = vmatprep.subr.mxu0 0.0
  %1483 = vmatpush1.msra.mxu0 0.0
  %1484 = vmatprep.subr.mxu0 0.0
  %1485 = vmatpush1.msra.mxu0 0.0
  %1486 = vmatprep.subr.mxu0 0.0
  %1487 = vmatpush1.msra.mxu0 0.0
  %1488 = vmatprep.subr.mxu0 0.0
  %1489 = vmatpush1.msra.mxu0 0.0
  %1490 = vmatprep.subr.mxu0 0.0
  %1491 = vmatpush1.msra.mxu0 0.0
  %1492 = vmatprep.subr.mxu0 0.0
  %1493 = vmatpush1.msra.mxu0 0.0
  %1494 = vmatprep.subr.mxu0 0.0
  %1495 = vmatpush1.msra.mxu0 0.0
  %1496 = vmatprep.subr.mxu0 0.0
  %1497 = vmatpush1.msra.mxu0 0.0
  %1498 = vmatprep.subr.mxu0 0.0
  %1499 = vmatpush1.msra.mxu0 0.0
  %1500 = vmatprep.subr.mxu0 0.0
  %1501 = vmatpush1.msra.mxu0 0.0
  %1502 = vmatprep.subr.mxu0 0.0
  %1503 = vmatpush1.msra.mxu0 0.0
  %1504 = vmatprep.subr.mxu0 0.0
  %1505 = vmatpush1.msra.mxu0 0.0
  %1506 = vmatprep.subr.mxu0 0.0
  %1507 = vmatpush1.msra.mxu0 0.0
  %1508 = vmatprep.mubr.f32.mxu0 0.0
  %1509 = vmatmul.mubr.f32.gmra.mrb[0].mxu0 %v1433
  %v1510 = vpop.f32.mrb[0].mxu0
  %v1511 = vadd.f32 0.0, %v1510
  %v1512 = vpop.f32.mrb[0].mxu0
  %1513 = vmatprep.mubr.f32.mxu0 0.0
  %1514 = vmatmul.mubr.f32.gmra.mrb[0].mxu0 %v1436
  %v1515 = vpop.f32.mrb[0].mxu0
  %v1516 = vadd.f32 0.0, %v1515
  %v1517 = vpop.f32.mrb[0].mxu0
  %1518 = vmatprep.mubr.f32.mxu0 0.0
  %1519 = vmatmul.mubr.f32.gmra.mrb[0].mxu0 %v1439
  %v1520 = vpop.f32.mrb[0].mxu0
  %v1521 = vadd.f32 0.0, %v1520
  %v1522 = vpop.f32.mrb[0].mxu0
  %1523 = vmatprep.mubr.f32.mxu0 0.0
  %1524 = vmatmul.mubr.f32.gmra.mrb[0].mxu0 %v1442
  %v1525 = vpop.f32.mrb[0].mxu0
  %v1526 = vadd.f32 0.0, %v1525
  %v1527 = vpop.f32.mrb[0].mxu0
  %1528 = vdwg.mxu0
  %v1530 = vsel %vm76, %v1392, 0
  %v1533 = vsel %vm76, %v1393, 0
  %v1536 = vsel %vm76, %v1394, 0
  %v1539 = vsel %vm76, %v1395, 0
  %1541 = vmatprep.subr.mxu0 0.0
  %1542 = vmatpush1.msra.mxu0 %v1384
  %1543 = vmatprep.subr.mxu0 0.0
  %1544 = vmatpush1.msra.mxu0 %v1386
  %1545 = vmatprep.subr.mxu0 0.0
  %1546 = vmatpush1.msra.mxu0 %v1388
  %1547 = vmatprep.subr.mxu0 0.0
  %1548 = vmatpush1.msra.mxu0 %v1390
  %1549 = vmatprep.subr.mxu0 0.0
  %1550 = vmatpush1.msra.mxu0 0.0
  %1551 = vmatprep.subr.mxu0 0.0
  %1552 = vmatpush1.msra.mxu0 0.0
  %1553 = vmatprep.subr.mxu0 0.0
  %1554 = vmatpush1.msra.mxu0 0.0
  %1555 = vmatprep.subr.mxu0 0.0
  %1556 = vmatpush1.msra.mxu0 0.0
  %1557 = vmatprep.subr.mxu0 0.0
  %1558 = vmatpush1.msra.mxu0 0.0
  %1559 = vmatprep.subr.mxu0 0.0
  %1560 = vmatpush1.msra.mxu0 0.0
  %1561 = vmatprep.subr.mxu0 0.0
  %1562 = vmatpush1.msra.mxu0 0.0
  %1563 = vmatprep.subr.mxu0 0.0
  %1564 = vmatpush1.msra.mxu0 0.0
  %1565 = vmatprep.subr.mxu0 0.0
  %1566 = vmatpush1.msra.mxu0 0.0
  %1567 = vmatprep.subr.mxu0 0.0
  %1568 = vmatpush1.msra.mxu0 0.0
  %1569 = vmatprep.subr.mxu0 0.0
  %1570 = vmatpush1.msra.mxu0 0.0
  %1571 = vmatprep.subr.mxu0 0.0
  %1572 = vmatpush1.msra.mxu0 0.0
  %1573 = vmatprep.subr.mxu0 0.0
  %1574 = vmatpush1.msra.mxu0 0.0
  %1575 = vmatprep.subr.mxu0 0.0
  %1576 = vmatpush1.msra.mxu0 0.0
  %1577 = vmatprep.subr.mxu0 0.0
  %1578 = vmatpush1.msra.mxu0 0.0
  %1579 = vmatprep.subr.mxu0 0.0
  %1580 = vmatpush1.msra.mxu0 0.0
  %1581 = vmatprep.subr.mxu0 0.0
  %1582 = vmatpush1.msra.mxu0 0.0
  %1583 = vmatprep.subr.mxu0 0.0
  %1584 = vmatpush1.msra.mxu0 0.0
  %1585 = vmatprep.subr.mxu0 0.0
  %1586 = vmatpush1.msra.mxu0 0.0
  %1587 = vmatprep.subr.mxu0 0.0
  %1588 = vmatpush1.msra.mxu0 0.0
  %1589 = vmatprep.subr.mxu0 0.0
  %1590 = vmatpush1.msra.mxu0 0.0
  %1591 = vmatprep.subr.mxu0 0.0
  %1592 = vmatpush1.msra.mxu0 0.0
  %1593 = vmatprep.subr.mxu0 0.0
  %1594 = vmatpush1.msra.mxu0 0.0
  %1595 = vmatprep.subr.mxu0 0.0
  %1596 = vmatpush1.msra.mxu0 0.0
  %1597 = vmatprep.subr.mxu0 0.0
  %1598 = vmatpush1.msra.mxu0 0.0
  %1599 = vmatprep.subr.mxu0 0.0
  %1600 = vmatpush1.msra.mxu0 0.0
  %1601 = vmatprep.subr.mxu0 0.0
  %1602 = vmatpush1.msra.mxu0 0.0
  %1603 = vmatprep.subr.mxu0 0.0
  %1604 = vmatpush1.msra.mxu0 0.0
  %1605 = vmatprep.mubr.f32.mxu0 0.0
  %1606 = vmatmul.mubr.f32.gmra.mrb[0].mxu0 %v1530
  %v1607 = vpop.f32.mrb[0].mxu0
  %v1608 = vadd.f32 %v1511, %v1607
  %v1609 = vpop.f32.mrb[0].mxu0
  %1610 = vmatprep.mubr.f32.mxu0 0.0
  %1611 = vmatmul.mubr.f32.gmra.mrb[0].mxu0 %v1533
  %v1612 = vpop.f32.mrb[0].mxu0
  %v1613 = vadd.f32 %v1516, %v1612
  %v1614 = vpop.f32.mrb[0].mxu0
  %1615 = vmatprep.mubr.f32.mxu0 0.0
  %1616 = vmatmul.mubr.f32.gmra.mrb[0].mxu0 %v1536
  %v1617 = vpop.f32.mrb[0].mxu0
  %v1618 = vadd.f32 %v1521, %v1617
  %v1619 = vpop.f32.mrb[0].mxu0
  %1620 = vmatprep.mubr.f32.mxu0 0.0
  %1621 = vmatmul.mubr.f32.gmra.mrb[0].mxu0 %v1539
  %v1622 = vpop.f32.mrb[0].mxu0
  %v1623 = vadd.f32 %v1526, %v1622
  %v1624 = vpop.f32.mrb[0].mxu0
  %1625 = vdwg.mxu0
  %v1626 = vld [vmem:[%s732] sm:$0xff]
  %v1627 = vld [vmem:[%s732 + $0x8] sm:$0xff]
  %v1628 = vld [vmem:[%s732 + $0x10] sm:$0xff]
  %v1629 = vld [vmem:[%s732 + $0x18] sm:$0xff]
  %1630 = vrot.lane.b32.xlu0 %v1384, 126
  %v1631 = vpop.permute.xlu0 %1630
  %1632 = vrot.lane.b32.xlu0 %v1385, 126
  %v1633 = vpop.permute.xlu0 %1632
  %1634 = vrot.lane.b32.xlu0 %v1386, 126
  %v1635 = vpop.permute.xlu0 %1634
  %1636 = vrot.lane.b32.xlu0 %v1387, 126
  %v1637 = vpop.permute.xlu0 %1636
  %1638 = vrot.lane.b32.xlu0 %v1388, 126
  %v1639 = vpop.permute.xlu0 %1638
  %1640 = vrot.lane.b32.xlu0 %v1389, 126
  %v1641 = vpop.permute.xlu0 %1640
  %1642 = vrot.lane.b32.xlu0 %v1390, 126
  %v1643 = vpop.permute.xlu0 %1642
  %1644 = vrot.lane.b32.xlu0 %v1391, 126
  %v1645 = vpop.permute.xlu0 %1644
  %v1646 = vsel %vm292, %v1631, %v1633
  %v1647 = vsel %vm292, %v1635, %v1637
  %v1648 = vsel %vm292, %v1639, %v1641
  %v1649 = vsel %vm292, %v1643, %v1645
  %v1655 = vsel %vm76, %v1626, 0
  %v1658 = vsel %vm76, %v1627, 0
  %v1661 = vsel %vm76, %v1628, 0
  %v1664 = vsel %vm76, %v1629, 0
  %1666 = vmatprep.subr.mxu0 0.0
  %1667 = vmatpush1.msra.mxu0 %v1646
  %1668 = vmatprep.subr.mxu0 0.0
  %1669 = vmatpush1.msra.mxu0 %v1647
  %1670 = vmatprep.subr.mxu0 0.0
  %1671 = vmatpush1.msra.mxu0 %v1648
  %1672 = vmatprep.subr.mxu0 0.0
  %1673 = vmatpush1.msra.mxu0 %v1649
  %1674 = vmatprep.subr.mxu0 0.0
  %1675 = vmatpush1.msra.mxu0 0.0
  %1676 = vmatprep.subr.mxu0 0.0
  %1677 = vmatpush1.msra.mxu0 0.0
  %1678 = vmatprep.subr.mxu0 0.0
  %1679 = vmatpush1.msra.mxu0 0.0
  %1680 = vmatprep.subr.mxu0 0.0
  %1681 = vmatpush1.msra.mxu0 0.0
  %1682 = vmatprep.subr.mxu0 0.0
  %1683 = vmatpush1.msra.mxu0 0.0
  %1684 = vmatprep.subr.mxu0 0.0
  %1685 = vmatpush1.msra.mxu0 0.0
  %1686 = vmatprep.subr.mxu0 0.0
  %1687 = vmatpush1.msra.mxu0 0.0
  %1688 = vmatprep.subr.mxu0 0.0
  %1689 = vmatpush1.msra.mxu0 0.0
  %1690 = vmatprep.subr.mxu0 0.0
  %1691 = vmatpush1.msra.mxu0 0.0
  %1692 = vmatprep.subr.mxu0 0.0
  %1693 = vmatpush1.msra.mxu0 0.0
  %1694 = vmatprep.subr.mxu0 0.0
  %1695 = vmatpush1.msra.mxu0 0.0
  %1696 = vmatprep.subr.mxu0 0.0
  %1697 = vmatpush1.msra.mxu0 0.0
  %1698 = vmatprep.subr.mxu0 0.0
  %1699 = vmatpush1.msra.mxu0 0.0
  %1700 = vmatprep.subr.mxu0 0.0
  %1701 = vmatpush1.msra.mxu0 0.0
  %1702 = vmatprep.subr.mxu0 0.0
  %1703 = vmatpush1.msra.mxu0 0.0
  %1704 = vmatprep.subr.mxu0 0.0
  %1705 = vmatpush1.msra.mxu0 0.0
  %1706 = vmatprep.subr.mxu0 0.0
  %1707 = vmatpush1.msra.mxu0 0.0
  %1708 = vmatprep.subr.mxu0 0.0
  %1709 = vmatpush1.msra.mxu0 0.0
  %1710 = vmatprep.subr.mxu0 0.0
  %1711 = vmatpush1.msra.mxu0 0.0
  %1712 = vmatprep.subr.mxu0 0.0
  %1713 = vmatpush1.msra.mxu0 0.0
  %1714 = vmatprep.subr.mxu0 0.0
  %1715 = vmatpush1.msra.mxu0 0.0
  %1716 = vmatprep.subr.mxu0 0.0
  %1717 = vmatpush1.msra.mxu0 0.0
  %1718 = vmatprep.subr.mxu0 0.0
  %1719 = vmatpush1.msra.mxu0 0.0
  %1720 = vmatprep.subr.mxu0 0.0
  %1721 = vmatpush1.msra.mxu0 0.0
  %1722 = vmatprep.subr.mxu0 0.0
  %1723 = vmatpush1.msra.mxu0 0.0
  %1724 = vmatprep.subr.mxu0 0.0
  %1725 = vmatpush1.msra.mxu0 0.0
  %1726 = vmatprep.subr.mxu0 0.0
  %1727 = vmatpush1.msra.mxu0 0.0
  %1728 = vmatprep.subr.mxu0 0.0
  %1729 = vmatpush1.msra.mxu0 0.0
  %1730 = vmatprep.mubr.f32.mxu0 0.0
  %1731 = vmatmul.mubr.f32.gmra.mrb[0].mxu0 %v1655
  %v1732 = vpop.f32.mrb[0].mxu0
  %v1733 = vadd.f32 0.0, %v1732
  %v1734 = vpop.f32.mrb[0].mxu0
  %1735 = vmatprep.mubr.f32.mxu0 0.0
  %1736 = vmatmul.mubr.f32.gmra.mrb[0].mxu0 %v1658
  %v1737 = vpop.f32.mrb[0].mxu0
  %v1738 = vadd.f32 0.0, %v1737
  %v1739 = vpop.f32.mrb[0].mxu0
  %1740 = vmatprep.mubr.f32.mxu0 0.0
  %1741 = vmatmul.mubr.f32.gmra.mrb[0].mxu0 %v1661
  %v1742 = vpop.f32.mrb[0].mxu0
  %v1743 = vadd.f32 0.0, %v1742
  %v1744 = vpop.f32.mrb[0].mxu0
  %1745 = vmatprep.mubr.f32.mxu0 0.0
  %1746 = vmatmul.mubr.f32.gmra.mrb[0].mxu0 %v1664
  %v1747 = vpop.f32.mrb[0].mxu0
  %v1748 = vadd.f32 0.0, %v1747
  %v1749 = vpop.f32.mrb[0].mxu0
  %1750 = vdwg.mxu0
  %v1751 = vadd.f32 %v1608, %v1733
  %v1752 = vadd.f32 %v1613, %v1738
  %v1753 = vadd.f32 %v1618, %v1743
  %v1754 = vadd.f32 %v1623, %v1748
  %v1755 = vld [vmem:[%s862] sm:$0xff]
  %v1756 = vld [vmem:[%s862 + $0x8] sm:$0xff]
  %v1757 = vld [vmem:[%s862 + $0x10] sm:$0xff]
  %v1758 = vld [vmem:[%s862 + $0x18] sm:$0xff]
  %1760 = vset.pattern.permute.xlu0 0
  %1761 = vperm.xlu0 %1760, %v1755
  %v1762 = vpop.permute.xlu0 %1761
  %1765 = vset.pattern.permute.xlu0 0
  %1766 = vperm.xlu0 %1765, %v1756
  %v1767 = vpop.permute.xlu0 %1766
  %1770 = vset.pattern.permute.xlu0 0
  %1771 = vperm.xlu0 %1770, %v1757
  %v1772 = vpop.permute.xlu0 %1771
  %1775 = vset.pattern.permute.xlu0 0
  %1776 = vperm.xlu0 %1775, %v1758
  %v1777 = vpop.permute.xlu0 %1776
  %v1779 = vmul.f32 %v1751, %v1762
  %v1780 = vmul.f32 %v1752, %v1767
  %v1781 = vmul.f32 %v1753, %v1772
  %v1782 = vmul.f32 %v1754, %v1777
  %v1783 = vld [vmem:[%s891] sm:$0xff]
  %v1784 = vld [vmem:[%s891 + $0x8] sm:$0xff]
  %v1785 = vld [vmem:[%s891 + $0x10] sm:$0xff]
  %v1786 = vld [vmem:[%s891 + $0x18] sm:$0xff]
  %1788 = vset.pattern.permute.xlu0 0
  %1789 = vperm.xlu0 %1788, %v1783
  %v1790 = vpop.permute.xlu0 %1789
  %1793 = vset.pattern.permute.xlu0 0
  %1794 = vperm.xlu0 %1793, %v1784
  %v1795 = vpop.permute.xlu0 %1794
  %1798 = vset.pattern.permute.xlu0 0
  %1799 = vperm.xlu0 %1798, %v1785
  %v1800 = vpop.permute.xlu0 %1799
  %1803 = vset.pattern.permute.xlu0 0
  %1804 = vperm.xlu0 %1803, %v1786
  %v1805 = vpop.permute.xlu0 %1804
  %v1807 = vadd.f32 %v1779, %v1790
  %v1808 = vadd.f32 %v1780, %v1795
  %v1809 = vadd.f32 %v1781, %v1800
  %v1810 = vadd.f32 %v1782, %v1805
  %v1811 = vmax.f32 %v1807, 0.0
  %v1812 = vmax.f32 %v1808, 0.0
  %v1813 = vmax.f32 %v1809, 0.0
  %v1814 = vmax.f32 %v1810, 0.0
  %s1815 = scalar_lea.vmem %s4, 32
  %1816 = vst [vmem:[%s1815] sm:$0xff] %v1811
  %1817 = vst [vmem:[%s1815 + $0x8] sm:$0xff] %v1812
  %1818 = vst [vmem:[%s1815 + $0x10] sm:$0xff] %v1813
  %1819 = vst [vmem:[%s1815 + $0x18] sm:$0xff] %v1814
  // Predicated region
  $region18: #{convnet_forward.1} parent=0 // pred_check
    _
  $region19: #{convnet_forward.1} parent=0 // pred_check_branch
    %1821 = sbr.rel (0) target = $region21
  $region20: #{convnet_forward.1} parent=0 // pred_region
    _
  $region21: #{convnet_forward.1} parent=0 // pred_fallthru
    _
  // Predicated region
  $region22: #{convnet_forward.1} parent=0 // pred_check
    _
  $region23: #{convnet_forward.1} parent=0 // pred_check_branch
    %1823 = sbr.rel (0) target = $region25
  $region24: #{convnet_forward.1} parent=0 // pred_region
    _
  $region25: #{convnet_forward.1} parent=0 // pred_fallthru
    _

</llo_original>
